<compile_context>
chip_gen: v5e
topology: v5e:2x2
jax: 0.10.0
libtpu: 0.0.40
codegen_flags: <defaults>
</compile_context>

<pallas_src>
import jax
import jax.numpy as jnp
from jax.experimental import pallas as pl
from jax.experimental.pallas import tpu as pltpu

SEQ = 10            # Flatten -> Linear(10, 10) fixes the sequence length to 10
D_FF = 2048         # TransformerEncoderLayer default dim_feedforward
LN_EPS = 1e-5
N_LAYERS = 2
SC_COLS = 16        # padded per-layer scalar table width

# scalar-table column indices (per encoder layer)
(_WQ, _WK, _WV, _BQ, _BK, _BV, _WO, _BO,
 _B2, _G1, _BE1, _G2, _BE2) = range(13)


# --------------------------------------------------------------------------
# Fused Pallas kernel: both encoder layers + residuals + flatten + fc head
# --------------------------------------------------------------------------
def _attns0_kernel(x_ref, sc_ref, w1_ref, b1_ref, w2_ref,
                   fc1w_ref, fc1b_ref, fc2w_ref, fc2b_ref, o_ref):
    x = x_ref[...]                       # (bt, S) f32 — d_model==1 kept implicit
    sc = sc_ref[...]                     # (N_LAYERS, SC_COLS)
    w1 = w1_ref[...]                     # (N_LAYERS, D_FF)  linear1 weight
    b1 = b1_ref[...]                     # (N_LAYERS, D_FF)  linear1 bias
    w2 = w2_ref[...]                     # (N_LAYERS, D_FF)  linear2 weight

    inv_sqrt_eps = LN_EPS ** -0.5        # compile-time constant

    def scal(layer, col):                # (1, 1) slice -> broadcasts on VPU
        return sc[layer:layer + 1, col:col + 1]

    def encoder_layer(xin, l):
        # ---- self-attention (embed_dim = 1, nhead = 1, scale = 1/sqrt(1)) ----
        q = xin * scal(l, _WQ) + scal(l, _BQ)          # (bt, S)
        k = xin * scal(l, _WK) + scal(l, _BK)
        v = xin * scal(l, _WV) + scal(l, _BV)
        s = q[:, :, None] * k[:, None, :]              # (bt, S, S) scores
        m = jnp.max(s, axis=-1, keepdims=True)
        p = jnp.exp(s - m)
        attn = p / jnp.sum(p, axis=-1, keepdims=True)  # softmax over keys
        ctx = jnp.sum(attn * v[:, None, :], axis=-1)   # (bt, S)
        sa = ctx * scal(l, _WO) + scal(l, _BO)         # out_proj (Linear(1,1))
        # dropout1: identity (eval semantics)

        # ---- add & norm1: LayerNorm over the size-1 feature dim ----
        h = xin + sa
        # mean over the singleton feature dim == h, var == 0
        h = scal(l, _G1) * (h - h) * inv_sqrt_eps + scal(l, _BE1)

        # ---- feed-forward: Linear(1, 2048) -> ReLU -> Linear(2048, 1) ----
        w1l = w1[l:l + 1, :][:, None, :]               # (1, 1, D_FF)
        b1l = b1[l:l + 1, :][:, None, :]
        w2l = w2[l:l + 1, :][:, None, :]
        ff = jnp.maximum(h[:, :, None] * w1l + b1l, 0.0)   # (bt, S, D_FF) lane-dense
        # dropout: identity (eval semantics)
        y = jnp.sum(ff * w2l, axis=-1) + scal(l, _B2)      # (bt, S)
        # dropout2: identity (eval semantics)

        # ---- add & norm2 ----
        z = h + y
        z = scal(l, _G2) * (z - z) * inv_sqrt_eps + scal(l, _BE2)
        return z

    # module-level residual: x = attn_l(x) + x, twice
    for l in range(N_LAYERS):
        x = encoder_layer(x, l) + x

    # ---- flatten (d_model == 1 -> already (bt, S)) + fc head ----
    h = jnp.dot(x, fc1w_ref[...], preferred_element_type=jnp.float32)
    h = jnp.maximum(h + fc1b_ref[...], 0.0)
    out = jnp.dot(h, fc2w_ref[...], preferred_element_type=jnp.float32)
    out = out + fc2b_ref[...]
    o_ref[...] = out.astype(o_ref.dtype)


# --------------------------------------------------------------------------
# Wrapper
# --------------------------------------------------------------------------
def _pick_batch_tile(batch):
    # largest tile that divides the batch and keeps (bt, 10, 2048) f32 small
    for bt in (64, 32, 16, 8):
        if batch % bt == 0:
            return bt
    return batch  # small batches: single full-batch block


def attns0_forward(x, params):
    x = x.astype(jnp.float32)            # torch: x.to(float); unsqueeze(-1) is implicit
    B, S = x.shape
    assert S == SEQ, f"sequence length must be {SEQ}, got {S}"
    bt = _pick_batch_tile(B)
    grid = (B // bt,)

    return pl.pallas_call(
        _attns0_kernel,
        out_shape=jax.ShapeDtypeStruct((B, 2), jnp.float32),
        grid=grid,
        in_specs=[
            pl.BlockSpec((bt, S), lambda i: (i, 0)),                 # x
            pl.BlockSpec((N_LAYERS, SC_COLS), lambda i: (0, 0)),     # scalar table
            pl.BlockSpec((N_LAYERS, D_FF), lambda i: (0, 0)),        # w1
            pl.BlockSpec((N_LAYERS, D_FF), lambda i: (0, 0)),        # b1
            pl.BlockSpec((N_LAYERS, D_FF), lambda i: (0, 0)),        # w2
            pl.BlockSpec((SEQ, SEQ), lambda i: (0, 0)),              # fc1_w
            pl.BlockSpec((1, SEQ), lambda i: (0, 0)),                # fc1_b
            pl.BlockSpec((SEQ, 2), lambda i: (0, 0)),                # fc2_w
            pl.BlockSpec((1, 2), lambda i: (0, 0)),                  # fc2_b
        ],
        out_specs=pl.BlockSpec((bt, 2), lambda i: (i, 0)),
        compiler_params=pltpu.CompilerParams(
            dimension_semantics=("parallel",)),
    )(x, params["scalars"], params["w1"], params["b1"], params["w2"],
      params["fc1_w"], params["fc1_b"], params["fc2_w"], params["fc2_b"])


# --------------------------------------------------------------------------
# Deterministic synthetic parameters (PyTorch-default-like distributions)
# --------------------------------------------------------------------------
def make_attns0_params(key):
    ks = jax.random.split(key, 8)

    def layer_params(k):
        kk = jax.random.split(k, 6)
        sc = jnp.zeros((SC_COLS,), jnp.float32)
        # MultiheadAttention(embed_dim=1): in_proj weight (3,1), bias 0
        inw = jax.random.uniform(kk[0], (3,), jnp.float32, -1.0, 1.0)
        outw = jax.random.uniform(kk[1], (), jnp.float32, -1.0, 1.0)
        sc = sc.at[_WQ].set(inw[0]).at[_WK].set(inw[1]).at[_WV].set(inw[2])
        sc = sc.at[_WO].set(outw)                      # biases bq/bk/bv/bo = 0
        # linear1: Linear(1, 2048), fan_in = 1 -> U(-1, 1)
        w1 = jax.random.uniform(kk[2], (D_FF,), jnp.float32, -1.0, 1.0)
        b1 = jax.random.uniform(kk[3], (D_FF,), jnp.float32, -1.0, 1.0)
        # linear2: Linear(2048, 1), fan_in = 2048
        bnd = 1.0 / (D_FF ** 0.5)
        w2 = jax.random.uniform(kk[4], (D_FF,), jnp.float32, -bnd, bnd)
        sc = sc.at[_B2].set(jax.random.uniform(kk[5], (), jnp.float32, -bnd, bnd))
        # LayerNorm defaults: gamma = 1, beta = 0
        sc = sc.at[_G1].set(1.0).at[_G2].set(1.0)
        return sc, w1, b1, w2

    layers = [layer_params(ks[i]) for i in range(N_LAYERS)]
    scalars = jnp.stack([p[0] for p in layers], axis=0)          # (2, 16)
    w1 = jnp.stack([p[1] for p in layers], axis=0)               # (2, 2048)
    b1 = jnp.stack([p[2] for p in layers], axis=0)
    w2 = jnp.stack([p[3] for p in layers], axis=0)

    bnd = 1.0 / (SEQ ** 0.5)
    fc1_w = jax.random.uniform(ks[4], (SEQ, SEQ), jnp.float32, -bnd, bnd)
    fc1_b = jax.random.uniform(ks[5], (1, SEQ), jnp.float32, -bnd, bnd)
    fc2_w = jax.random.uniform(ks[6], (SEQ, 2), jnp.float32, -bnd, bnd)
    fc2_b = jax.random.uniform(ks[7], (1, 2), jnp.float32, -bnd, bnd)

    return dict(scalars=scalars, w1=w1, b1=b1, w2=w2,
                fc1_w=fc1_w, fc1_b=fc1_b, fc2_w=fc2_w, fc2_b=fc2_b)


if __name__ == "__main__":
    key = jax.random.PRNGKey(0)
    kp, kx = jax.random.split(key)
    params = make_attns0_params(kp)
    # input consistent with the module: Flatten -> Linear(10, 10) => x is (B, 10)
    x = jax.random.normal(kx, (2, SEQ), jnp.float32)
    out = attns0_forward(x, params)
    out = jax.block_until_ready(out)
    assert out.shape == (2, 2), out.shape
    assert bool(jnp.all(jnp.isfinite(out)))
    print("KERNEL_OK")
</pallas_src>

<mosaic_0001>
module attributes {stable_mosaic.version = 11 : i64} {
  func.func @_attns0_kernel(%arg0: i32, %arg1: memref<2x10xf32, #tpu.memory_space<vmem>>, %arg2: memref<2x16xf32, #tpu.memory_space<vmem>>, %arg3: memref<2x2048xf32, #tpu.memory_space<vmem>>, %arg4: memref<2x2048xf32, #tpu.memory_space<vmem>>, %arg5: memref<2x2048xf32, #tpu.memory_space<vmem>>, %arg6: memref<10x10xf32, #tpu.memory_space<vmem>>, %arg7: memref<1x10xf32, #tpu.memory_space<vmem>>, %arg8: memref<10x2xf32, #tpu.memory_space<vmem>>, %arg9: memref<1x2xf32, #tpu.memory_space<vmem>>, %arg10: memref<2x2xf32, #tpu.memory_space<vmem>>) attributes {dimension_semantics = [#tpu.dimension_semantics<parallel>], iteration_bounds = array<i64: 1>, scalar_prefetch = 0 : i64, scratch_operands = 0 : i64, tpu.core_type = #tpu.core_type<tc>, window_params = [{transform_indices = @transform_0, window_bounds = array<i64: 2, 10>}, {pipeline_mode = #tpu.pipeline_mode<synchronous>, transform_indices = @transform_1, window_bounds = array<i64: 2, 16>}, {pipeline_mode = #tpu.pipeline_mode<synchronous>, transform_indices = @transform_2, window_bounds = array<i64: 2, 2048>}, {pipeline_mode = #tpu.pipeline_mode<synchronous>, transform_indices = @transform_3, window_bounds = array<i64: 2, 2048>}, {pipeline_mode = #tpu.pipeline_mode<synchronous>, transform_indices = @transform_4, window_bounds = array<i64: 2, 2048>}, {pipeline_mode = #tpu.pipeline_mode<synchronous>, transform_indices = @transform_5, window_bounds = array<i64: 10, 10>}, {pipeline_mode = #tpu.pipeline_mode<synchronous>, transform_indices = @transform_6, window_bounds = array<i64: 1, 10>}, {pipeline_mode = #tpu.pipeline_mode<synchronous>, transform_indices = @transform_7, window_bounds = array<i64: 10, 2>}, {pipeline_mode = #tpu.pipeline_mode<synchronous>, transform_indices = @transform_8, window_bounds = array<i64: 1, 2>}, {transform_indices = @transform_9, window_bounds = array<i64: 2, 2>}]} {
    %c0 = arith.constant 0 : index
    %c0_0 = arith.constant 0 : index
    %0 = vector.load %arg1[%c0, %c0_0] : memref<2x10xf32, #tpu.memory_space<vmem>>, vector<2x10xf32>
    %c0_1 = arith.constant 0 : index
    %c0_2 = arith.constant 0 : index
    %1 = vector.load %arg2[%c0_1, %c0_2] : memref<2x16xf32, #tpu.memory_space<vmem>>, vector<2x16xf32>
    %c0_3 = arith.constant 0 : index
    %c0_4 = arith.constant 0 : index
    %2 = vector.load %arg3[%c0_3, %c0_4] : memref<2x2048xf32, #tpu.memory_space<vmem>>, vector<2x2048xf32>
    %c0_5 = arith.constant 0 : index
    %c0_6 = arith.constant 0 : index
    %3 = vector.load %arg4[%c0_5, %c0_6] : memref<2x2048xf32, #tpu.memory_space<vmem>>, vector<2x2048xf32>
    %c0_7 = arith.constant 0 : index
    %c0_8 = arith.constant 0 : index
    %4 = vector.load %arg5[%c0_7, %c0_8] : memref<2x2048xf32, #tpu.memory_space<vmem>>, vector<2x2048xf32>
    %5 = vector.extract_strided_slice %1 {offsets = [0, 0], sizes = [1, 1], strides = [1, 1]} : vector<2x16xf32> to vector<1x1xf32>
    %6 = vector.broadcast %5 : vector<1x1xf32> to vector<2x10xf32>
    %7 = arith.mulf %0, %6 : vector<2x10xf32>
    %8 = vector.extract_strided_slice %1 {offsets = [0, 3], sizes = [1, 1], strides = [1, 1]} : vector<2x16xf32> to vector<1x1xf32>
    %9 = vector.broadcast %8 : vector<1x1xf32> to vector<2x10xf32>
    %10 = arith.addf %7, %9 : vector<2x10xf32>
    %11 = vector.extract_strided_slice %1 {offsets = [0, 1], sizes = [1, 1], strides = [1, 1]} : vector<2x16xf32> to vector<1x1xf32>
    %12 = vector.broadcast %11 : vector<1x1xf32> to vector<2x10xf32>
    %13 = arith.mulf %0, %12 : vector<2x10xf32>
    %14 = vector.extract_strided_slice %1 {offsets = [0, 4], sizes = [1, 1], strides = [1, 1]} : vector<2x16xf32> to vector<1x1xf32>
    %15 = vector.broadcast %14 : vector<1x1xf32> to vector<2x10xf32>
    %16 = arith.addf %13, %15 : vector<2x10xf32>
    %17 = vector.extract_strided_slice %1 {offsets = [0, 2], sizes = [1, 1], strides = [1, 1]} : vector<2x16xf32> to vector<1x1xf32>
    %18 = vector.broadcast %17 : vector<1x1xf32> to vector<2x10xf32>
    %19 = arith.mulf %0, %18 : vector<2x10xf32>
    %20 = vector.extract_strided_slice %1 {offsets = [0, 5], sizes = [1, 1], strides = [1, 1]} : vector<2x16xf32> to vector<1x1xf32>
    %21 = vector.broadcast %20 : vector<1x1xf32> to vector<2x10xf32>
    %22 = arith.addf %19, %21 : vector<2x10xf32>
    %23 = vector.shape_cast %10 : vector<2x10xf32> to vector<2x10x1xf32>
    %24 = vector.shape_cast %16 : vector<2x10xf32> to vector<2x1x10xf32>
    %25 = vector.broadcast %23 : vector<2x10x1xf32> to vector<2x10x10xf32>
    %26 = vector.broadcast %24 : vector<2x1x10xf32> to vector<2x10x10xf32>
    %27 = arith.mulf %25, %26 : vector<2x10x10xf32>
    %cst = arith.constant dense<0xFF800000> : vector<2x10xf32>
    %28 = vector.multi_reduction <maximumf>, %27, %cst [2] : vector<2x10x10xf32> to vector<2x10xf32>
    %29 = vector.shape_cast %28 : vector<2x10xf32> to vector<2x10x1xf32>
    %30 = vector.broadcast %29 : vector<2x10x1xf32> to vector<2x10x10xf32>
    %31 = arith.subf %27, %30 : vector<2x10x10xf32>
    %32 = math.exp %31 : vector<2x10x10xf32>
    %cst_9 = arith.constant dense<0.000000e+00> : vector<2x10xf32>
    %33 = vector.multi_reduction <add>, %32, %cst_9 [2] : vector<2x10x10xf32> to vector<2x10xf32>
    %34 = vector.shape_cast %33 : vector<2x10xf32> to vector<2x10x1xf32>
    %35 = vector.broadcast %34 : vector<2x10x1xf32> to vector<2x10x10xf32>
    %36 = arith.divf %32, %35 : vector<2x10x10xf32>
    %37 = vector.shape_cast %22 : vector<2x10xf32> to vector<2x1x10xf32>
    %38 = vector.broadcast %37 : vector<2x1x10xf32> to vector<2x10x10xf32>
    %39 = arith.mulf %36, %38 : vector<2x10x10xf32>
    %cst_10 = arith.constant dense<0.000000e+00> : vector<2x10xf32>
    %40 = vector.multi_reduction <add>, %39, %cst_10 [2] : vector<2x10x10xf32> to vector<2x10xf32>
    %41 = vector.extract_strided_slice %1 {offsets = [0, 6], sizes = [1, 1], strides = [1, 1]} : vector<2x16xf32> to vector<1x1xf32>
    %42 = vector.broadcast %41 : vector<1x1xf32> to vector<2x10xf32>
    %43 = arith.mulf %40, %42 : vector<2x10xf32>
    %44 = vector.extract_strided_slice %1 {offsets = [0, 7], sizes = [1, 1], strides = [1, 1]} : vector<2x16xf32> to vector<1x1xf32>
    %45 = vector.broadcast %44 : vector<1x1xf32> to vector<2x10xf32>
    %46 = arith.addf %43, %45 : vector<2x10xf32>
    %47 = arith.addf %0, %46 : vector<2x10xf32>
    %48 = vector.extract_strided_slice %1 {offsets = [0, 9], sizes = [1, 1], strides = [1, 1]} : vector<2x16xf32> to vector<1x1xf32>
    %49 = arith.subf %47, %47 : vector<2x10xf32>
    %50 = vector.broadcast %48 : vector<1x1xf32> to vector<2x10xf32>
    %51 = arith.mulf %50, %49 : vector<2x10xf32>
    %cst_11 = arith.constant 316.227753 : f32
    %52 = vector.broadcast %cst_11 : f32 to vector<2x10xf32>
    %53 = arith.mulf %51, %52 : vector<2x10xf32>
    %54 = vector.extract_strided_slice %1 {offsets = [0, 10], sizes = [1, 1], strides = [1, 1]} : vector<2x16xf32> to vector<1x1xf32>
    %55 = vector.broadcast %54 : vector<1x1xf32> to vector<2x10xf32>
    %56 = arith.addf %53, %55 : vector<2x10xf32>
    %57 = vector.extract_strided_slice %2 {offsets = [0, 0], sizes = [1, 2048], strides = [1, 1]} : vector<2x2048xf32> to vector<1x2048xf32>
    %58 = vector.shape_cast %57 : vector<1x2048xf32> to vector<1x1x2048xf32>
    %59 = vector.extract_strided_slice %3 {offsets = [0, 0], sizes = [1, 2048], strides = [1, 1]} : vector<2x2048xf32> to vector<1x2048xf32>
    %60 = vector.shape_cast %59 : vector<1x2048xf32> to vector<1x1x2048xf32>
    %61 = vector.extract_strided_slice %4 {offsets = [0, 0], sizes = [1, 2048], strides = [1, 1]} : vector<2x2048xf32> to vector<1x2048xf32>
    %62 = vector.shape_cast %61 : vector<1x2048xf32> to vector<1x1x2048xf32>
    %63 = vector.shape_cast %56 : vector<2x10xf32> to vector<2x10x1xf32>
    %64 = vector.broadcast %63 : vector<2x10x1xf32> to vector<2x10x2048xf32>
    %65 = vector.broadcast %58 : vector<1x1x2048xf32> to vector<2x10x2048xf32>
    %66 = arith.mulf %64, %65 : vector<2x10x2048xf32>
    %67 = vector.broadcast %60 : vector<1x1x2048xf32> to vector<2x10x2048xf32>
    %68 = arith.addf %66, %67 : vector<2x10x2048xf32>
    %cst_12 = arith.constant 0.000000e+00 : f32
    %69 = vector.broadcast %cst_12 : f32 to vector<2x10x2048xf32>
    %70 = arith.maximumf %68, %69 : vector<2x10x2048xf32>
    %71 = vector.broadcast %62 : vector<1x1x2048xf32> to vector<2x10x2048xf32>
    %72 = arith.mulf %70, %71 : vector<2x10x2048xf32>
    %cst_13 = arith.constant dense<0.000000e+00> : vector<2x10xf32>
    %73 = vector.multi_reduction <add>, %72, %cst_13 [2] : vector<2x10x2048xf32> to vector<2x10xf32>
    %74 = vector.extract_strided_slice %1 {offsets = [0, 8], sizes = [1, 1], strides = [1, 1]} : vector<2x16xf32> to vector<1x1xf32>
    %75 = vector.broadcast %74 : vector<1x1xf32> to vector<2x10xf32>
    %76 = arith.addf %73, %75 : vector<2x10xf32>
    %77 = arith.addf %56, %76 : vector<2x10xf32>
    %78 = vector.extract_strided_slice %1 {offsets = [0, 11], sizes = [1, 1], strides = [1, 1]} : vector<2x16xf32> to vector<1x1xf32>
    %79 = arith.subf %77, %77 : vector<2x10xf32>
    %80 = vector.broadcast %78 : vector<1x1xf32> to vector<2x10xf32>
    %81 = arith.mulf %80, %79 : vector<2x10xf32>
    %cst_14 = arith.constant 316.227753 : f32
    %82 = vector.broadcast %cst_14 : f32 to vector<2x10xf32>
    %83 = arith.mulf %81, %82 : vector<2x10xf32>
    %84 = vector.extract_strided_slice %1 {offsets = [0, 12], sizes = [1, 1], strides = [1, 1]} : vector<2x16xf32> to vector<1x1xf32>
    %85 = vector.broadcast %84 : vector<1x1xf32> to vector<2x10xf32>
    %86 = arith.addf %83, %85 : vector<2x10xf32>
    %87 = arith.addf %86, %0 : vector<2x10xf32>
    %88 = vector.extract_strided_slice %1 {offsets = [1, 0], sizes = [1, 1], strides = [1, 1]} : vector<2x16xf32> to vector<1x1xf32>
    %89 = vector.broadcast %88 : vector<1x1xf32> to vector<2x10xf32>
    %90 = arith.mulf %87, %89 : vector<2x10xf32>
    %91 = vector.extract_strided_slice %1 {offsets = [1, 3], sizes = [1, 1], strides = [1, 1]} : vector<2x16xf32> to vector<1x1xf32>
    %92 = vector.broadcast %91 : vector<1x1xf32> to vector<2x10xf32>
    %93 = arith.addf %90, %92 : vector<2x10xf32>
    %94 = vector.extract_strided_slice %1 {offsets = [1, 1], sizes = [1, 1], strides = [1, 1]} : vector<2x16xf32> to vector<1x1xf32>
    %95 = vector.broadcast %94 : vector<1x1xf32> to vector<2x10xf32>
    %96 = arith.mulf %87, %95 : vector<2x10xf32>
    %97 = vector.extract_strided_slice %1 {offsets = [1, 4], sizes = [1, 1], strides = [1, 1]} : vector<2x16xf32> to vector<1x1xf32>
    %98 = vector.broadcast %97 : vector<1x1xf32> to vector<2x10xf32>
    %99 = arith.addf %96, %98 : vector<2x10xf32>
    %100 = vector.extract_strided_slice %1 {offsets = [1, 2], sizes = [1, 1], strides = [1, 1]} : vector<2x16xf32> to vector<1x1xf32>
    %101 = vector.broadcast %100 : vector<1x1xf32> to vector<2x10xf32>
    %102 = arith.mulf %87, %101 : vector<2x10xf32>
    %103 = vector.extract_strided_slice %1 {offsets = [1, 5], sizes = [1, 1], strides = [1, 1]} : vector<2x16xf32> to vector<1x1xf32>
    %104 = vector.broadcast %103 : vector<1x1xf32> to vector<2x10xf32>
    %105 = arith.addf %102, %104 : vector<2x10xf32>
    %106 = vector.shape_cast %93 : vector<2x10xf32> to vector<2x10x1xf32>
    %107 = vector.shape_cast %99 : vector<2x10xf32> to vector<2x1x10xf32>
    %108 = vector.broadcast %106 : vector<2x10x1xf32> to vector<2x10x10xf32>
    %109 = vector.broadcast %107 : vector<2x1x10xf32> to vector<2x10x10xf32>
    %110 = arith.mulf %108, %109 : vector<2x10x10xf32>
    %cst_15 = arith.constant dense<0xFF800000> : vector<2x10xf32>
    %111 = vector.multi_reduction <maximumf>, %110, %cst_15 [2] : vector<2x10x10xf32> to vector<2x10xf32>
    %112 = vector.shape_cast %111 : vector<2x10xf32> to vector<2x10x1xf32>
    %113 = vector.broadcast %112 : vector<2x10x1xf32> to vector<2x10x10xf32>
    %114 = arith.subf %110, %113 : vector<2x10x10xf32>
    %115 = math.exp %114 : vector<2x10x10xf32>
    %cst_16 = arith.constant dense<0.000000e+00> : vector<2x10xf32>
    %116 = vector.multi_reduction <add>, %115, %cst_16 [2] : vector<2x10x10xf32> to vector<2x10xf32>
    %117 = vector.shape_cast %116 : vector<2x10xf32> to vector<2x10x1xf32>
    %118 = vector.broadcast %117 : vector<2x10x1xf32> to vector<2x10x10xf32>
    %119 = arith.divf %115, %118 : vector<2x10x10xf32>
    %120 = vector.shape_cast %105 : vector<2x10xf32> to vector<2x1x10xf32>
    %121 = vector.broadcast %120 : vector<2x1x10xf32> to vector<2x10x10xf32>
    %122 = arith.mulf %119, %121 : vector<2x10x10xf32>
    %cst_17 = arith.constant dense<0.000000e+00> : vector<2x10xf32>
    %123 = vector.multi_reduction <add>, %122, %cst_17 [2] : vector<2x10x10xf32> to vector<2x10xf32>
    %124 = vector.extract_strided_slice %1 {offsets = [1, 6], sizes = [1, 1], strides = [1, 1]} : vector<2x16xf32> to vector<1x1xf32>
    %125 = vector.broadcast %124 : vector<1x1xf32> to vector<2x10xf32>
    %126 = arith.mulf %123, %125 : vector<2x10xf32>
    %127 = vector.extract_strided_slice %1 {offsets = [1, 7], sizes = [1, 1], strides = [1, 1]} : vector<2x16xf32> to vector<1x1xf32>
    %128 = vector.broadcast %127 : vector<1x1xf32> to vector<2x10xf32>
    %129 = arith.addf %126, %128 : vector<2x10xf32>
    %130 = arith.addf %87, %129 : vector<2x10xf32>
    %131 = vector.extract_strided_slice %1 {offsets = [1, 9], sizes = [1, 1], strides = [1, 1]} : vector<2x16xf32> to vector<1x1xf32>
    %132 = arith.subf %130, %130 : vector<2x10xf32>
    %133 = vector.broadcast %131 : vector<1x1xf32> to vector<2x10xf32>
    %134 = arith.mulf %133, %132 : vector<2x10xf32>
    %cst_18 = arith.constant 316.227753 : f32
    %135 = vector.broadcast %cst_18 : f32 to vector<2x10xf32>
    %136 = arith.mulf %134, %135 : vector<2x10xf32>
    %137 = vector.extract_strided_slice %1 {offsets = [1, 10], sizes = [1, 1], strides = [1, 1]} : vector<2x16xf32> to vector<1x1xf32>
    %138 = vector.broadcast %137 : vector<1x1xf32> to vector<2x10xf32>
    %139 = arith.addf %136, %138 : vector<2x10xf32>
    %140 = vector.extract_strided_slice %2 {offsets = [1, 0], sizes = [1, 2048], strides = [1, 1]} : vector<2x2048xf32> to vector<1x2048xf32>
    %141 = vector.shape_cast %140 : vector<1x2048xf32> to vector<1x1x2048xf32>
    %142 = vector.extract_strided_slice %3 {offsets = [1, 0], sizes = [1, 2048], strides = [1, 1]} : vector<2x2048xf32> to vector<1x2048xf32>
    %143 = vector.shape_cast %142 : vector<1x2048xf32> to vector<1x1x2048xf32>
    %144 = vector.extract_strided_slice %4 {offsets = [1, 0], sizes = [1, 2048], strides = [1, 1]} : vector<2x2048xf32> to vector<1x2048xf32>
    %145 = vector.shape_cast %144 : vector<1x2048xf32> to vector<1x1x2048xf32>
    %146 = vector.shape_cast %139 : vector<2x10xf32> to vector<2x10x1xf32>
    %147 = vector.broadcast %146 : vector<2x10x1xf32> to vector<2x10x2048xf32>
    %148 = vector.broadcast %141 : vector<1x1x2048xf32> to vector<2x10x2048xf32>
    %149 = arith.mulf %147, %148 : vector<2x10x2048xf32>
    %150 = vector.broadcast %143 : vector<1x1x2048xf32> to vector<2x10x2048xf32>
    %151 = arith.addf %149, %150 : vector<2x10x2048xf32>
    %cst_19 = arith.constant 0.000000e+00 : f32
    %152 = vector.broadcast %cst_19 : f32 to vector<2x10x2048xf32>
    %153 = arith.maximumf %151, %152 : vector<2x10x2048xf32>
    %154 = vector.broadcast %145 : vector<1x1x2048xf32> to vector<2x10x2048xf32>
    %155 = arith.mulf %153, %154 : vector<2x10x2048xf32>
    %cst_20 = arith.constant dense<0.000000e+00> : vector<2x10xf32>
    %156 = vector.multi_reduction <add>, %155, %cst_20 [2] : vector<2x10x2048xf32> to vector<2x10xf32>
    %157 = vector.extract_strided_slice %1 {offsets = [1, 8], sizes = [1, 1], strides = [1, 1]} : vector<2x16xf32> to vector<1x1xf32>
    %158 = vector.broadcast %157 : vector<1x1xf32> to vector<2x10xf32>
    %159 = arith.addf %156, %158 : vector<2x10xf32>
    %160 = arith.addf %139, %159 : vector<2x10xf32>
    %161 = vector.extract_strided_slice %1 {offsets = [1, 11], sizes = [1, 1], strides = [1, 1]} : vector<2x16xf32> to vector<1x1xf32>
    %162 = arith.subf %160, %160 : vector<2x10xf32>
    %163 = vector.broadcast %161 : vector<1x1xf32> to vector<2x10xf32>
    %164 = arith.mulf %163, %162 : vector<2x10xf32>
    %cst_21 = arith.constant 316.227753 : f32
    %165 = vector.broadcast %cst_21 : f32 to vector<2x10xf32>
    %166 = arith.mulf %164, %165 : vector<2x10xf32>
    %167 = vector.extract_strided_slice %1 {offsets = [1, 12], sizes = [1, 1], strides = [1, 1]} : vector<2x16xf32> to vector<1x1xf32>
    %168 = vector.broadcast %167 : vector<1x1xf32> to vector<2x10xf32>
    %169 = arith.addf %166, %168 : vector<2x10xf32>
    %170 = arith.addf %169, %87 : vector<2x10xf32>
    %c0_22 = arith.constant 0 : index
    %c0_23 = arith.constant 0 : index
    %171 = vector.load %arg6[%c0_22, %c0_23] : memref<10x10xf32, #tpu.memory_space<vmem>>, vector<10x10xf32>
    %cst_24 = arith.constant dense<0.000000e+00> : vector<2x10xf32>
    %172 = tpu.matmul %170, %171, %cst_24 {dimension_numbers = #tpu.dot_dimension_numbers<[1], [0], [0], [1], [0, 0, 1, 1], [], []>} : vector<2x10xf32>, vector<10x10xf32>, vector<2x10xf32> -> vector<2x10xf32>
    %c0_25 = arith.constant 0 : index
    %c0_26 = arith.constant 0 : index
    %173 = vector.load %arg7[%c0_25, %c0_26] : memref<1x10xf32, #tpu.memory_space<vmem>>, vector<1x10xf32>
    %174 = vector.broadcast %173 : vector<1x10xf32> to vector<2x10xf32>
    %175 = arith.addf %172, %174 : vector<2x10xf32>
    %cst_27 = arith.constant 0.000000e+00 : f32
    %176 = vector.broadcast %cst_27 : f32 to vector<2x10xf32>
    %177 = arith.maximumf %175, %176 : vector<2x10xf32>
    %c0_28 = arith.constant 0 : index
    %c0_29 = arith.constant 0 : index
    %178 = vector.load %arg8[%c0_28, %c0_29] : memref<10x2xf32, #tpu.memory_space<vmem>>, vector<10x2xf32>
    %cst_30 = arith.constant dense<0.000000e+00> : vector<2x2xf32>
    %179 = tpu.matmul %177, %178, %cst_30 {dimension_numbers = #tpu.dot_dimension_numbers<[1], [0], [0], [1], [0, 0, 1, 1], [], []>} : vector<2x10xf32>, vector<10x2xf32>, vector<2x2xf32> -> vector<2x2xf32>
    %c0_31 = arith.constant 0 : index
    %c0_32 = arith.constant 0 : index
    %180 = vector.load %arg9[%c0_31, %c0_32] : memref<1x2xf32, #tpu.memory_space<vmem>>, vector<1x2xf32>
    %181 = vector.broadcast %180 : vector<1x2xf32> to vector<2x2xf32>
    %182 = arith.addf %179, %181 : vector<2x2xf32>
    %c0_33 = arith.constant 0 : index
    %c0_34 = arith.constant 0 : index
    %183 = vector.load %arg10[%c0_33, %c0_34] : memref<2x2xf32, #tpu.memory_space<vmem>>, vector<2x2xf32>
    tpu.vector_store %arg10[%c0_33, %c0_34], %182 {strides = array<i32>} : memref<2x2xf32, #tpu.memory_space<vmem>>, vector<2x2xf32>,
    return
  }
  func.func @transform_0(%arg0: i32) -> (i32, i32) {
    %c0_i32 = arith.constant 0 : i32
    %c0_i32_0 = arith.constant 0 : i32
    return %arg0, %c0_i32 : i32, i32
  }
  func.func @transform_1(%arg0: i32) -> (i32, i32) {
    %c0_i32 = arith.constant 0 : i32
    %c0_i32_0 = arith.constant 0 : i32
    %c0_i32_1 = arith.constant 0 : i32
    return %c0_i32, %c0_i32_0 : i32, i32
  }
  func.func @transform_2(%arg0: i32) -> (i32, i32) {
    %c0_i32 = arith.constant 0 : i32
    %c0_i32_0 = arith.constant 0 : i32
    %c0_i32_1 = arith.constant 0 : i32
    return %c0_i32, %c0_i32_0 : i32, i32
  }
  func.func @transform_3(%arg0: i32) -> (i32, i32) {
    %c0_i32 = arith.constant 0 : i32
    %c0_i32_0 = arith.constant 0 : i32
    %c0_i32_1 = arith.constant 0 : i32
    return %c0_i32, %c0_i32_0 : i32, i32
  }
  func.func @transform_4(%arg0: i32) -> (i32, i32) {
    %c0_i32 = arith.constant 0 : i32
    %c0_i32_0 = arith.constant 0 : i32
    %c0_i32_1 = arith.constant 0 : i32
    return %c0_i32, %c0_i32_0 : i32, i32
  }
  func.func @transform_5(%arg0: i32) -> (i32, i32) {
    %c0_i32 = arith.constant 0 : i32
    %c0_i32_0 = arith.constant 0 : i32
    %c0_i32_1 = arith.constant 0 : i32
    return %c0_i32, %c0_i32_0 : i32, i32
  }
  func.func @transform_6(%arg0: i32) -> (i32, i32) {
    %c0_i32 = arith.constant 0 : i32
    %c0_i32_0 = arith.constant 0 : i32
    %c0_i32_1 = arith.constant 0 : i32
    return %c0_i32, %c0_i32_0 : i32, i32
  }
  func.func @transform_7(%arg0: i32) -> (i32, i32) {
    %c0_i32 = arith.constant 0 : i32
    %c0_i32_0 = arith.constant 0 : i32
    %c0_i32_1 = arith.constant 0 : i32
    return %c0_i32, %c0_i32_0 : i32, i32
  }
  func.func @transform_8(%arg0: i32) -> (i32, i32) {
    %c0_i32 = arith.constant 0 : i32
    %c0_i32_0 = arith.constant 0 : i32
    %c0_i32_1 = arith.constant 0 : i32
    return %c0_i32, %c0_i32_0 : i32, i32
  }
  func.func @transform_9(%arg0: i32) -> (i32, i32) {
    %c0_i32 = arith.constant 0 : i32
    %c0_i32_0 = arith.constant 0 : i32
    return %arg0, %c0_i32 : i32, i32
  }
}

</mosaic_0001>

<llo_original>
// kernel: tpu_custom_call.1
$region0: #{tpu_custom_call.1}
  #allocation0 [shape = 'u32[]', space=smem, size = 0x4, offset = 0x4, fixed_abs, tag = 'smem constant byte address 0x4 - core index']
  #allocation1 [shape = 'u32[72,128]{1,0:T(1,128)}', space=vmem, size = 0x9000, scoped, tag = 'internal scratch']
  %s0 = inlined_call_operand.vmem [shape: f32[2,10], index: 0, kind: input, shape index: {}]
  %s1 = inlined_call_operand.hbm [shape: f32[2,16], index: 1, kind: input, shape index: {}]
  %s2 = inlined_call_operand.hbm [shape: f32[2,2048], index: 2, kind: input, shape index: {}]
  %s3 = inlined_call_operand.hbm [shape: f32[2,2048], index: 3, kind: input, shape index: {}]
  %s4 = inlined_call_operand.hbm [shape: f32[2,2048], index: 4, kind: input, shape index: {}]
  %s5 = inlined_call_operand.vmem [shape: f32[10,10], index: 5, kind: input, shape index: {}]
  %s6 = inlined_call_operand.vmem [shape: f32[1,10], index: 6, kind: input, shape index: {}]
  %s7 = inlined_call_operand.vmem [shape: f32[10,2], index: 7, kind: input, shape index: {}]
  %s8 = inlined_call_operand.vmem [shape: f32[1,2], index: 8, kind: input, shape index: {}]
  %s9 = inlined_call_operand.hbm [shape: f32[2,2], index: 9, kind: output, shape index: {}]
  %s10 = sld [smem:[#allocation0]]
  $region62: #{tpu_custom_call.1} parent=0
    _
  %s12 = ssub.s32 1, %s10
  %s13 = scalar_select 0, %s12, %s10
  $region1: #{tpu_custom_call.1} parent=0
    #allocation2 [shape = 'u8[1024]{0}', space=vmem, size = 0x400, scoped, tag = 'input window, operand 1, single buffered']
    #allocation3 [shape = 's32[1]{0}', space=sflag, size = 0x4, scoped, tag = 'scoped memory for tpu_custom_call.1']
    #allocation4 [shape = 's32[1]{0}', space=sflag, size = 0x4, scoped, tag = 'scoped memory for tpu_custom_call.1']
    #allocation5 [shape = 'u8[16384]{0}', space=vmem, size = 0x4000, scoped, tag = 'input window, operand 2, single buffered']
    #allocation6 [shape = 's32[1]{0}', space=sflag, size = 0x4, scoped, tag = 'scoped memory for tpu_custom_call.1']
    #allocation7 [shape = 'u8[16384]{0}', space=vmem, size = 0x4000, scoped, tag = 'input window, operand 3, single buffered']
    #allocation8 [shape = 'u8[16384]{0}', space=vmem, size = 0x4000, scoped, tag = 'input window, operand 4, single buffered']
    #allocation9 [shape = 's32[1]{0}', space=sflag, size = 0x4, scoped, tag = 'scoped memory for tpu_custom_call.1']
    #allocation10 [shape = 'u8[1024]{0}', space=vmem, size = 0x400, scoped, tag = 'output window, operand 0, single buffered']
    %14 = vsyncpa [#allocation3], 0
    %15 = vsyncpa [#allocation6], 0
    %16 = vsyncpa [#allocation9], 0
    %17 = vsyncpa [#allocation4], 0
    // Predicated region
    $region2: #{tpu_custom_call.1} parent=1 // pred_check
      _
    $region3: #{tpu_custom_call.1} parent=1 // pred_check_branch
      %19 = sbr.rel (0) target = $region5
    $region4: #{tpu_custom_call.1} parent=1 // pred_region
      _
    $region5: #{tpu_custom_call.1} parent=1 // pred_fallthru
      _
    // Predicated region
    $region6: #{tpu_custom_call.1} parent=1 // pred_check
      _
    $region7: #{tpu_custom_call.1} parent=1 // pred_check_branch
      %21 = sbr.rel (0) target = $region9
    $region8: #{tpu_custom_call.1} parent=1 // pred_region
      %23 = vsyncadd [#allocation3], 0
      %s25 = sshll.u32 %s1, 4
      %s26 = int_to_ptr.hbm [resolvable:$true] %s25
      %s27 = sshll.u32 [#allocation2], 4
      %s28 = int_to_ptr.vmem [resolvable:$true] %s27
      %30 = dma.hbm_to_vmem [thread:$0]  %s26, 32, %s28, [#allocation3]
    $region9: #{tpu_custom_call.1} parent=1 // pred_fallthru
      _
    // Predicated region
    $region10: #{tpu_custom_call.1} parent=1 // pred_check
      _
    $region11: #{tpu_custom_call.1} parent=1 // pred_check_branch
      %32 = sbr.rel (0) target = $region13
    $region12: #{tpu_custom_call.1} parent=1 // pred_region
      %34 = vsyncadd [#allocation6], 0
      %s36 = sshll.u32 %s2, 4
      %s37 = int_to_ptr.hbm [resolvable:$true] %s36
      %s38 = sshll.u32 [#allocation5], 4
      %s39 = int_to_ptr.vmem [resolvable:$true] %s38
      %41 = dma.hbm_to_vmem [thread:$0]  %s37, 512, %s39, [#allocation6]
    $region13: #{tpu_custom_call.1} parent=1 // pred_fallthru
      _
    // Predicated region
    $region14: #{tpu_custom_call.1} parent=1 // pred_check
      _
    $region15: #{tpu_custom_call.1} parent=1 // pred_check_branch
      %43 = sbr.rel (0) target = $region17
    $region16: #{tpu_custom_call.1} parent=1 // pred_region
      %45 = vsyncadd [#allocation6], 0
      %s47 = sshll.u32 %s3, 4
      %s48 = int_to_ptr.hbm [resolvable:$true] %s47
      %s49 = sshll.u32 [#allocation7], 4
      %s50 = int_to_ptr.vmem [resolvable:$true] %s49
      %52 = dma.hbm_to_vmem [thread:$0]  %s48, 512, %s50, [#allocation6]
    $region17: #{tpu_custom_call.1} parent=1 // pred_fallthru
      _
    // Predicated region
    $region18: #{tpu_custom_call.1} parent=1 // pred_check
      _
    $region19: #{tpu_custom_call.1} parent=1 // pred_check_branch
      %54 = sbr.rel (0) target = $region21
    $region20: #{tpu_custom_call.1} parent=1 // pred_region
      %56 = vsyncadd [#allocation9], 0
      %s58 = sshll.u32 %s4, 4
      %s59 = int_to_ptr.hbm [resolvable:$true] %s58
      %s60 = sshll.u32 [#allocation8], 4
      %s61 = int_to_ptr.vmem [resolvable:$true] %s60
      %63 = dma.hbm_to_vmem [thread:$0]  %s59, 512, %s61, [#allocation9]
    $region21: #{tpu_custom_call.1} parent=1 // pred_fallthru
      _
    // Predicated region
    $region22: #{tpu_custom_call.1} parent=1 // pred_check
      _
    $region23: #{tpu_custom_call.1} parent=1 // pred_check_branch
      %65 = sbr.rel (0) target = $region25
    $region24: #{tpu_custom_call.1} parent=1 // pred_region
      _
    $region25: #{tpu_custom_call.1} parent=1 // pred_fallthru
      _
    // Predicated region
    $region26: #{tpu_custom_call.1} parent=1 // pred_check
      _
    $region27: #{tpu_custom_call.1} parent=1 // pred_check_branch
      %67 = sbr.rel (0) target = $region29
    $region28: #{tpu_custom_call.1} parent=1 // pred_region
      _
    $region29: #{tpu_custom_call.1} parent=1 // pred_fallthru
      _
    // Predicated region
    $region30: #{tpu_custom_call.1} parent=1 // pred_check
      _
    $region31: #{tpu_custom_call.1} parent=1 // pred_check_branch
      %69 = sbr.rel (0) target = $region33
    $region32: #{tpu_custom_call.1} parent=1 // pred_region
      _
    $region33: #{tpu_custom_call.1} parent=1 // pred_fallthru
      _
    // Predicated region
    $region34: #{tpu_custom_call.1} parent=1 // pred_check
      _
    $region35: #{tpu_custom_call.1} parent=1 // pred_check_branch
      %71 = sbr.rel (0) target = $region37
    $region36: #{tpu_custom_call.1} parent=1 // pred_region
      _
    $region37: #{tpu_custom_call.1} parent=1 // pred_fallthru
      _
    // Predicated region
    $region38: #{tpu_custom_call.1} parent=1 // pred_check
      _
    $region39: #{tpu_custom_call.1} parent=1 // pred_check_branch
      %73 = sbr.rel (0) target = $region41
    $region40: #{tpu_custom_call.1} parent=1 // pred_region
      %75 = dma.done [#allocation3], 32
    $region41: #{tpu_custom_call.1} parent=1 // pred_fallthru
      _
    // Predicated region
    $region42: #{tpu_custom_call.1} parent=1 // pred_check
      _
    $region43: #{tpu_custom_call.1} parent=1 // pred_check_branch
      %77 = sbr.rel (0) target = $region45
    $region44: #{tpu_custom_call.1} parent=1 // pred_region
      %79 = dma.done [#allocation6], 512
    $region45: #{tpu_custom_call.1} parent=1 // pred_fallthru
      _
    // Predicated region
    $region46: #{tpu_custom_call.1} parent=1 // pred_check
      _
    $region47: #{tpu_custom_call.1} parent=1 // pred_check_branch
      %81 = sbr.rel (0) target = $region49
    $region48: #{tpu_custom_call.1} parent=1 // pred_region
      %83 = dma.done [#allocation6], 512
    $region49: #{tpu_custom_call.1} parent=1 // pred_fallthru
      _
    // Predicated region
    $region50: #{tpu_custom_call.1} parent=1 // pred_check
      _
    $region51: #{tpu_custom_call.1} parent=1 // pred_check_branch
      %85 = sbr.rel (0) target = $region53
    $region52: #{tpu_custom_call.1} parent=1 // pred_region
      %87 = dma.done [#allocation9], 512
    $region53: #{tpu_custom_call.1} parent=1 // pred_fallthru
      _
    %v88 = vld [vmem:[%s0] sm:$0x3]
    %v89 = vld [vmem:[#allocation2] sm:$0x3]
    %v90 = vld [vmem:[#allocation5] sm:$0xff]
    %v91 = vld [vmem:[#allocation5 + $0x8] sm:$0xff]
    %v92 = vld [vmem:[#allocation5 + $0x10] sm:$0xff]
    %v93 = vld [vmem:[#allocation5 + $0x18] sm:$0xff]
    %v94 = vld [vmem:[#allocation7] sm:$0xff]
    %v95 = vld [vmem:[#allocation7 + $0x8] sm:$0xff]
    %v96 = vld [vmem:[#allocation7 + $0x10] sm:$0xff]
    %v97 = vld [vmem:[#allocation7 + $0x18] sm:$0xff]
    %v98 = vld [vmem:[#allocation8] sm:$0xff]
    %v99 = vld [vmem:[#allocation8 + $0x8] sm:$0xff]
    %v100 = vld [vmem:[#allocation8 + $0x10] sm:$0xff]
    %v101 = vld [vmem:[#allocation8 + $0x18] sm:$0xff]
    %s103 = vtos %v89
    %v104 = vstv %s103
    %v106 = vmul.f32 %v88, %v104
    %107 = vrot.lane.b32.xlu0 %v89, 125
    %v108 = vpop.permute.xlu0 %107
    %s109 = vtos %v108
    %v110 = vstv %s109
    %v112 = vadd.f32 %v106, %v110
    %113 = vrot.lane.b32.xlu0 %v89, 127
    %v114 = vpop.permute.xlu0 %113
    %s115 = vtos %v114
    %v116 = vstv %s115
    %v118 = vmul.f32 %v88, %v116
    %119 = vrot.lane.b32.xlu0 %v89, 124
    %v120 = vpop.permute.xlu0 %119
    %s121 = vtos %v120
    %v122 = vstv %s121
    %v124 = vadd.f32 %v118, %v122
    %125 = vrot.lane.b32.xlu0 %v89, 126
    %v126 = vpop.permute.xlu0 %125
    %s127 = vtos %v126
    %v128 = vstv %s127
    %v130 = vmul.f32 %v88, %v128
    %131 = vrot.lane.b32.xlu0 %v89, 123
    %v132 = vpop.permute.xlu0 %131
    %s133 = vtos %v132
    %v134 = vstv %s133
    %v136 = vadd.f32 %v130, %v134
    %v137 = vperm.slane %v112, 0
    %v138 = vlaneseq
    %v139 = vshrl.u32 %v138, 7
    %141 = vset.pattern.permute.xlu0 %v139
    %142 = vperm.xlu0 %141, %v137
    %v143 = vpop.permute.xlu0 %142
    %v144 = vlaneseq
    %v145 = vshrl.u32 %v144, 7
    %v146 = vadd.s32 %v145, 8
    %147 = vset.pattern.permute.xlu0 %v146
    %148 = vperm.xlu0 %147, %v137
    %v149 = vpop.permute.xlu0 %148
    %v150 = vperm.slane %v112, 1
    %v151 = vlaneseq
    %v152 = vshrl.u32 %v151, 7
    %154 = vset.pattern.permute.xlu0 %v152
    %155 = vperm.xlu0 %154, %v150
    %v156 = vpop.permute.xlu0 %155
    %v157 = vlaneseq
    %v158 = vshrl.u32 %v157, 7
    %v159 = vadd.s32 %v158, 8
    %160 = vset.pattern.permute.xlu0 %v159
    %161 = vperm.xlu0 %160, %v150
    %v162 = vpop.permute.xlu0 %161
    %v164 = vrot.slane %v124, 1
    %v165 = vperm.slane %v124, 0
    %v166 = vperm.slane %v164, 0
    %v169 = vmul.f32 %v143, %v165
    %v170 = vmul.f32 %v149, %v165
    %v171 = vmul.f32 %v156, %v166
    %v172 = vmul.f32 %v162, %v166
    %vm173 = vcmask 80896
    %v174 = vsel %vm173, %v169, -inf
    %175 = vmax.xlane.f32.xlu0 %v174
    %v176 = vpop.xlane.xlu0 %175
    %vm177 = vcmask 74752
    %v178 = vsel %vm177, %v170, -inf
    %179 = vmax.xlane.f32.xlu0 %v178
    %v180 = vpop.xlane.xlu0 %179
    %v181 = vsel %vm173, %v171, -inf
    %182 = vmax.xlane.f32.xlu0 %v181
    %v183 = vpop.xlane.xlu0 %182
    %v184 = vsel %vm177, %v172, -inf
    %185 = vmax.xlane.f32.xlu0 %v184
    %v186 = vpop.xlane.xlu0 %185
    %v187 = vsub.f32 %v169, %v176
    %v188 = vsub.f32 %v170, %v180
    %v189 = vsub.f32 %v171, %v183
    %v190 = vsub.f32 %v172, %v186
    %v191 = vmul.f32 %v187, 1.442695
    %v192 = vpow.pop %v191
    %v193 = vmul.f32 %v188, 1.442695
    %v194 = vpow.pop %v193
    %v195 = vmul.f32 %v189, 1.442695
    %v196 = vpow.pop %v195
    %v197 = vmul.f32 %v190, 1.442695
    %v198 = vpow.pop %v197
    %v199 = vsel %vm173, %v192, 0.0
    %200 = vadd.xlane.f32.xlu0 %v199
    %v201 = vpop.xlane.xlu0 %200
    %v202 = vsel %vm177, %v194, 0.0
    %203 = vadd.xlane.f32.xlu0 %v202
    %v204 = vpop.xlane.xlu0 %203
    %v205 = vsel %vm173, %v196, 0.0
    %206 = vadd.xlane.f32.xlu0 %v205
    %v207 = vpop.xlane.xlu0 %206
    %v208 = vsel %vm177, %v198, 0.0
    %209 = vadd.xlane.f32.xlu0 %v208
    %v210 = vpop.xlane.xlu0 %209
    %v211 = vrcp.pop %v201
    %v212 = vmul.f32 %v201, %v211
    %v213 = vsub.f32 1.0, %v212
    %v214 = vmul.f32 %v211, %v213
    %v215 = vadd.f32 %v211, %v214
    %vm216 = vweird.f32 %v201
    %vm217 = vweird.f32 %v211
    %vm218 = vmor %vm216, %vm217
    %v219 = vsel %vm218, %v211, %v215
    %v220 = vand.u32 2147483647, %v201
    %vm221 = vcmp.eq.f32.partialorder %v220, 8.507059e+37
    %v222 = vand.u32 %v201, 2147483648
    %v223 = vor.u32 1.1754944e-38, %v222
    %v224 = vsel %vm221, %v223, %v219
    %v225 = vmul.f32 %v192, %v224
    %v226 = vrcp.pop %v204
    %v227 = vmul.f32 %v204, %v226
    %v228 = vsub.f32 1.0, %v227
    %v229 = vmul.f32 %v226, %v228
    %v230 = vadd.f32 %v226, %v229
    %vm231 = vweird.f32 %v204
    %vm232 = vweird.f32 %v226
    %vm233 = vmor %vm231, %vm232
    %v234 = vsel %vm233, %v226, %v230
    %v235 = vand.u32 2147483647, %v204
    %vm236 = vcmp.eq.f32.partialorder %v235, 8.507059e+37
    %v237 = vand.u32 %v204, 2147483648
    %v238 = vor.u32 1.1754944e-38, %v237
    %v239 = vsel %vm236, %v238, %v234
    %v240 = vmul.f32 %v194, %v239
    %v241 = vrcp.pop %v207
    %v242 = vmul.f32 %v207, %v241
    %v243 = vsub.f32 1.0, %v242
    %v244 = vmul.f32 %v241, %v243
    %v245 = vadd.f32 %v241, %v244
    %vm246 = vweird.f32 %v207
    %vm247 = vweird.f32 %v241
    %vm248 = vmor %vm246, %vm247
    %v249 = vsel %vm248, %v241, %v245
    %v250 = vand.u32 2147483647, %v207
    %vm251 = vcmp.eq.f32.partialorder %v250, 8.507059e+37
    %v252 = vand.u32 %v207, 2147483648
    %v253 = vor.u32 1.1754944e-38, %v252
    %v254 = vsel %vm251, %v253, %v249
    %v255 = vmul.f32 %v196, %v254
    %v256 = vrcp.pop %v210
    %v257 = vmul.f32 %v210, %v256
    %v258 = vsub.f32 1.0, %v257
    %v259 = vmul.f32 %v256, %v258
    %v260 = vadd.f32 %v256, %v259
    %vm261 = vweird.f32 %v210
    %vm262 = vweird.f32 %v256
    %vm263 = vmor %vm261, %vm262
    %v264 = vsel %vm263, %v256, %v260
    %v265 = vand.u32 2147483647, %v210
    %vm266 = vcmp.eq.f32.partialorder %v265, 8.507059e+37
    %v267 = vand.u32 %v210, 2147483648
    %v268 = vor.u32 1.1754944e-38, %v267
    %v269 = vsel %vm266, %v268, %v264
    %v270 = vmul.f32 %v198, %v269
    %v272 = vrot.slane %v136, 1
    %v273 = vperm.slane %v136, 0
    %v274 = vperm.slane %v272, 0
    %v277 = vmul.f32 %v225, %v273
    %v278 = vmul.f32 %v240, %v273
    %v279 = vmul.f32 %v255, %v274
    %v280 = vmul.f32 %v270, %v274
    %v281 = vsel %vm173, %v277, 0.0
    %282 = vadd.xlane.f32.xlu0 %v281
    %v283 = vpop.xlane.xlu0 %282
    %v284 = vsel %vm177, %v278, 0.0
    %285 = vadd.xlane.f32.xlu0 %v284
    %v286 = vpop.xlane.xlu0 %285
    %v287 = vsel %vm173, %v279, 0.0
    %288 = vadd.xlane.f32.xlu0 %v287
    %v289 = vpop.xlane.xlu0 %288
    %v290 = vsel %vm177, %v280, 0.0
    %291 = vadd.xlane.f32.xlu0 %v290
    %v292 = vpop.xlane.xlu0 %291
    %293 = vrot.lane.b32.xlu0 %v89, 122
    %v294 = vpop.permute.xlu0 %293
    %s295 = vtos %v294
    %v296 = vstv %s295
    %v298 = vmul.f32 %v283, %v296
    %v299 = vmul.f32 %v286, %v296
    %v300 = vmul.f32 %v289, %v296
    %v301 = vmul.f32 %v292, %v296
    %302 = vrot.lane.b32.xlu0 %v89, 121
    %v303 = vpop.permute.xlu0 %302
    %s304 = vtos %v303
    %v305 = vstv %s304
    %v307 = vadd.f32 %v298, %v305
    %v308 = vadd.f32 %v299, %v305
    %v309 = vadd.f32 %v300, %v305
    %v310 = vadd.f32 %v301, %v305
    %v315 = vlaneseq
    %v316 = vand.u32 %v315, 127
    %v317 = vperm.slane %v307, %v316
    %v318 = vadd.s32 %v316, 4294967288
    %v319 = vperm.slane %v308, %v318
    %vm320 = vcmask 130112
    %v321 = vsel %vm320, %v319, %v317
    %v322 = vperm.slane %v309, %v316
    %v323 = vperm.slane %v310, %v318
    %v324 = vsel %vm320, %v323, %v322
    %vm325 = vcmask 1041409
    %v326 = vsel %vm325, %v324, %v321
    %v328 = vadd.f32 %v88, %v326
    %v329 = vsub.f32 %v328, %v328
    %330 = vrot.lane.b32.xlu0 %v89, 119
    %v331 = vpop.permute.xlu0 %330
    %s332 = vtos %v331
    %v333 = vstv %s332
    %v335 = vmul.f32 %v333, %v329
    %v336 = vmul.f32 %v335, 316.22775
    %337 = vrot.lane.b32.xlu0 %v89, 118
    %v338 = vpop.permute.xlu0 %337
    %s339 = vtos %v338
    %v340 = vstv %s339
    %v342 = vadd.f32 %v336, %v340
    %v343 = vperm.slane %v342, 0
    %v344 = vlaneseq
    %v345 = vshrl.u32 %v344, 7
    %347 = vset.pattern.permute.xlu0 %v345
    %348 = vperm.xlu0 %347, %v343
    %v349 = vpop.permute.xlu0 %348
    %v350 = vlaneseq
    %v351 = vshrl.u32 %v350, 7
    %v352 = vadd.s32 %v351, 8
    %353 = vset.pattern.permute.xlu0 %v352
    %354 = vperm.xlu0 %353, %v343
    %v355 = vpop.permute.xlu0 %354
    %v356 = vperm.slane %v342, 1
    %v357 = vlaneseq
    %v358 = vshrl.u32 %v357, 7
    %360 = vset.pattern.permute.xlu0 %v358
    %361 = vperm.xlu0 %360, %v356
    %v362 = vpop.permute.xlu0 %361
    %v363 = vlaneseq
    %v364 = vshrl.u32 %v363, 7
    %v365 = vadd.s32 %v364, 8
    %366 = vset.pattern.permute.xlu0 %v365
    %367 = vperm.xlu0 %366, %v356
    %v368 = vpop.permute.xlu0 %367
    %v373 = vperm.slane %v90, 0
    %v374 = vperm.slane %v90, 2
    %v375 = vperm.slane %v90, 4
    %v376 = vperm.slane %v90, 6
    %v377 = vperm.slane %v91, 0
    %v378 = vperm.slane %v91, 2
    %v379 = vperm.slane %v91, 4
    %v380 = vperm.slane %v91, 6
    %v381 = vperm.slane %v92, 0
    %v382 = vperm.slane %v92, 2
    %v383 = vperm.slane %v92, 4
    %v384 = vperm.slane %v92, 6
    %v385 = vperm.slane %v93, 0
    %v386 = vperm.slane %v93, 2
    %v387 = vperm.slane %v93, 4
    %v388 = vperm.slane %v93, 6
    %v405 = vperm.slane %v373, 0
    %v406 = vperm.slane %v374, 0
    %v407 = vperm.slane %v375, 0
    %v408 = vperm.slane %v376, 0
    %v409 = vperm.slane %v377, 0
    %v410 = vperm.slane %v378, 0
    %v411 = vperm.slane %v379, 0
    %v412 = vperm.slane %v380, 0
    %v413 = vperm.slane %v381, 0
    %v414 = vperm.slane %v382, 0
    %v415 = vperm.slane %v383, 0
    %v416 = vperm.slane %v384, 0
    %v417 = vperm.slane %v385, 0
    %v418 = vperm.slane %v386, 0
    %v419 = vperm.slane %v387, 0
    %v420 = vperm.slane %v388, 0
    %v421 = vmul.f32 %v349, %v405
    %v422 = vmul.f32 %v349, %v406
    %v423 = vmul.f32 %v349, %v407
    %v424 = vmul.f32 %v349, %v408
    %v425 = vmul.f32 %v349, %v409
    %v426 = vmul.f32 %v349, %v410
    %v427 = vmul.f32 %v349, %v411
    %v428 = vmul.f32 %v349, %v412
    %v429 = vmul.f32 %v349, %v413
    %v430 = vmul.f32 %v349, %v414
    %v431 = vmul.f32 %v349, %v415
    %v432 = vmul.f32 %v349, %v416
    %v433 = vmul.f32 %v349, %v417
    %v434 = vmul.f32 %v349, %v418
    %v435 = vmul.f32 %v349, %v419
    %v436 = vmul.f32 %v349, %v420
    %v437 = vmul.f32 %v355, %v405
    %v438 = vmul.f32 %v355, %v406
    %v439 = vmul.f32 %v355, %v407
    %v440 = vmul.f32 %v355, %v408
    %v441 = vmul.f32 %v355, %v409
    %v442 = vmul.f32 %v355, %v410
    %v443 = vmul.f32 %v355, %v411
    %v444 = vmul.f32 %v355, %v412
    %v445 = vmul.f32 %v355, %v413
    %v446 = vmul.f32 %v355, %v414
    %v447 = vmul.f32 %v355, %v415
    %v448 = vmul.f32 %v355, %v416
    %v449 = vmul.f32 %v355, %v417
    %v450 = vmul.f32 %v355, %v418
    %v451 = vmul.f32 %v355, %v419
    %v452 = vmul.f32 %v355, %v420
    %v453 = vmul.f32 %v362, %v405
    %v454 = vmul.f32 %v362, %v406
    %v455 = vmul.f32 %v362, %v407
    %v456 = vmul.f32 %v362, %v408
    %v457 = vmul.f32 %v362, %v409
    %v458 = vmul.f32 %v362, %v410
    %v459 = vmul.f32 %v362, %v411
    %v460 = vmul.f32 %v362, %v412
    %v461 = vmul.f32 %v362, %v413
    %v462 = vmul.f32 %v362, %v414
    %v463 = vmul.f32 %v362, %v415
    %v464 = vmul.f32 %v362, %v416
    %v465 = vmul.f32 %v362, %v417
    %v466 = vmul.f32 %v362, %v418
    %v467 = vmul.f32 %v362, %v419
    %v468 = vmul.f32 %v362, %v420
    %v469 = vmul.f32 %v368, %v405
    %v470 = vmul.f32 %v368, %v406
    %v471 = vmul.f32 %v368, %v407
    %v472 = vmul.f32 %v368, %v408
    %v473 = vmul.f32 %v368, %v409
    %v474 = vmul.f32 %v368, %v410
    %v475 = vmul.f32 %v368, %v411
    %v476 = vmul.f32 %v368, %v412
    %v477 = vmul.f32 %v368, %v413
    %v478 = vmul.f32 %v368, %v414
    %v479 = vmul.f32 %v368, %v415
    %v480 = vmul.f32 %v368, %v416
    %v481 = vmul.f32 %v368, %v417
    %v482 = vmul.f32 %v368, %v418
    %v483 = vmul.f32 %v368, %v419
    %v484 = vmul.f32 %v368, %v420
    %v489 = vperm.slane %v94, 0
    %v490 = vperm.slane %v94, 2
    %v491 = vperm.slane %v94, 4
    %v492 = vperm.slane %v94, 6
    %v493 = vperm.slane %v95, 0
    %v494 = vperm.slane %v95, 2
    %v495 = vperm.slane %v95, 4
    %v496 = vperm.slane %v95, 6
    %v497 = vperm.slane %v96, 0
    %v498 = vperm.slane %v96, 2
    %v499 = vperm.slane %v96, 4
    %v500 = vperm.slane %v96, 6
    %v501 = vperm.slane %v97, 0
    %v502 = vperm.slane %v97, 2
    %v503 = vperm.slane %v97, 4
    %v504 = vperm.slane %v97, 6
    %v521 = vperm.slane %v489, 0
    %v522 = vperm.slane %v490, 0
    %v523 = vperm.slane %v491, 0
    %v524 = vperm.slane %v492, 0
    %v525 = vperm.slane %v493, 0
    %v526 = vperm.slane %v494, 0
    %v527 = vperm.slane %v495, 0
    %v528 = vperm.slane %v496, 0
    %v529 = vperm.slane %v497, 0
    %v530 = vperm.slane %v498, 0
    %v531 = vperm.slane %v499, 0
    %v532 = vperm.slane %v500, 0
    %v533 = vperm.slane %v501, 0
    %v534 = vperm.slane %v502, 0
    %v535 = vperm.slane %v503, 0
    %v536 = vperm.slane %v504, 0
    %v537 = vadd.f32 %v421, %v521
    %v538 = vadd.f32 %v422, %v522
    %v539 = vadd.f32 %v423, %v523
    %v540 = vadd.f32 %v424, %v524
    %v541 = vadd.f32 %v425, %v525
    %v542 = vadd.f32 %v426, %v526
    %v543 = vadd.f32 %v427, %v527
    %v544 = vadd.f32 %v428, %v528
    %v545 = vadd.f32 %v429, %v529
    %v546 = vadd.f32 %v430, %v530
    %v547 = vadd.f32 %v431, %v531
    %v548 = vadd.f32 %v432, %v532
    %v549 = vadd.f32 %v433, %v533
    %v550 = vadd.f32 %v434, %v534
    %v551 = vadd.f32 %v435, %v535
    %v552 = vadd.f32 %v436, %v536
    %v553 = vadd.f32 %v437, %v521
    %v554 = vadd.f32 %v438, %v522
    %v555 = vadd.f32 %v439, %v523
    %v556 = vadd.f32 %v440, %v524
    %v557 = vadd.f32 %v441, %v525
    %v558 = vadd.f32 %v442, %v526
    %v559 = vadd.f32 %v443, %v527
    %v560 = vadd.f32 %v444, %v528
    %v561 = vadd.f32 %v445, %v529
    %v562 = vadd.f32 %v446, %v530
    %v563 = vadd.f32 %v447, %v531
    %v564 = vadd.f32 %v448, %v532
    %v565 = vadd.f32 %v449, %v533
    %v566 = vadd.f32 %v450, %v534
    %v567 = vadd.f32 %v451, %v535
    %v568 = vadd.f32 %v452, %v536
    %v569 = vadd.f32 %v453, %v521
    %v570 = vadd.f32 %v454, %v522
    %v571 = vadd.f32 %v455, %v523
    %v572 = vadd.f32 %v456, %v524
    %v573 = vadd.f32 %v457, %v525
    %v574 = vadd.f32 %v458, %v526
    %v575 = vadd.f32 %v459, %v527
    %v576 = vadd.f32 %v460, %v528
    %v577 = vadd.f32 %v461, %v529
    %v578 = vadd.f32 %v462, %v530
    %v579 = vadd.f32 %v463, %v531
    %v580 = vadd.f32 %v464, %v532
    %v581 = vadd.f32 %v465, %v533
    %v582 = vadd.f32 %v466, %v534
    %v583 = vadd.f32 %v467, %v535
    %v584 = vadd.f32 %v468, %v536
    %v585 = vadd.f32 %v469, %v521
    %v586 = vadd.f32 %v470, %v522
    %v587 = vadd.f32 %v471, %v523
    %v588 = vadd.f32 %v472, %v524
    %v589 = vadd.f32 %v473, %v525
    %v590 = vadd.f32 %v474, %v526
    %v591 = vadd.f32 %v475, %v527
    %v592 = vadd.f32 %v476, %v528
    %v593 = vadd.f32 %v477, %v529
    %v594 = vadd.f32 %v478, %v530
    %v595 = vadd.f32 %v479, %v531
    %v596 = vadd.f32 %v480, %v532
    %v597 = vadd.f32 %v481, %v533
    %v598 = vadd.f32 %v482, %v534
    %v599 = vadd.f32 %v483, %v535
    %v600 = vadd.f32 %v484, %v536
    %v601 = vmax.f32 %v537, 0.0
    %v602 = vmax.f32 %v538, 0.0
    %v603 = vmax.f32 %v539, 0.0
    %v604 = vmax.f32 %v540, 0.0
    %v605 = vmax.f32 %v541, 0.0
    %v606 = vmax.f32 %v542, 0.0
    %v607 = vmax.f32 %v543, 0.0
    %v608 = vmax.f32 %v544, 0.0
    %v609 = vmax.f32 %v545, 0.0
    %v610 = vmax.f32 %v546, 0.0
    %v611 = vmax.f32 %v547, 0.0
    %v612 = vmax.f32 %v548, 0.0
    %v613 = vmax.f32 %v549, 0.0
    %v614 = vmax.f32 %v550, 0.0
    %v615 = vmax.f32 %v551, 0.0
    %v616 = vmax.f32 %v552, 0.0
    %v617 = vmax.f32 %v553, 0.0
    %v618 = vmax.f32 %v554, 0.0
    %v619 = vmax.f32 %v555, 0.0
    %v620 = vmax.f32 %v556, 0.0
    %v621 = vmax.f32 %v557, 0.0
    %v622 = vmax.f32 %v558, 0.0
    %v623 = vmax.f32 %v559, 0.0
    %v624 = vmax.f32 %v560, 0.0
    %v625 = vmax.f32 %v561, 0.0
    %v626 = vmax.f32 %v562, 0.0
    %v627 = vmax.f32 %v563, 0.0
    %v628 = vmax.f32 %v564, 0.0
    %v629 = vmax.f32 %v565, 0.0
    %v630 = vmax.f32 %v566, 0.0
    %v631 = vmax.f32 %v567, 0.0
    %v632 = vmax.f32 %v568, 0.0
    %v633 = vmax.f32 %v569, 0.0
    %v634 = vmax.f32 %v570, 0.0
    %v635 = vmax.f32 %v571, 0.0
    %v636 = vmax.f32 %v572, 0.0
    %v637 = vmax.f32 %v573, 0.0
    %v638 = vmax.f32 %v574, 0.0
    %v639 = vmax.f32 %v575, 0.0
    %v640 = vmax.f32 %v576, 0.0
    %v641 = vmax.f32 %v577, 0.0
    %v642 = vmax.f32 %v578, 0.0
    %v643 = vmax.f32 %v579, 0.0
    %v644 = vmax.f32 %v580, 0.0
    %v645 = vmax.f32 %v581, 0.0
    %v646 = vmax.f32 %v582, 0.0
    %v647 = vmax.f32 %v583, 0.0
    %v648 = vmax.f32 %v584, 0.0
    %v649 = vmax.f32 %v585, 0.0
    %v650 = vmax.f32 %v586, 0.0
    %v651 = vmax.f32 %v587, 0.0
    %v652 = vmax.f32 %v588, 0.0
    %v653 = vmax.f32 %v589, 0.0
    %v654 = vmax.f32 %v590, 0.0
    %v655 = vmax.f32 %v591, 0.0
    %v656 = vmax.f32 %v592, 0.0
    %v657 = vmax.f32 %v593, 0.0
    %v658 = vmax.f32 %v594, 0.0
    %v659 = vmax.f32 %v595, 0.0
    %v660 = vmax.f32 %v596, 0.0
    %v661 = vmax.f32 %v597, 0.0
    %v662 = vmax.f32 %v598, 0.0
    %v663 = vmax.f32 %v599, 0.0
    %v664 = vmax.f32 %v600, 0.0
    %v669 = vperm.slane %v98, 0
    %v670 = vperm.slane %v98, 2
    %v671 = vperm.slane %v98, 4
    %v672 = vperm.slane %v98, 6
    %v673 = vperm.slane %v99, 0
    %v674 = vperm.slane %v99, 2
    %v675 = vperm.slane %v99, 4
    %v676 = vperm.slane %v99, 6
    %v677 = vperm.slane %v100, 0
    %v678 = vperm.slane %v100, 2
    %v679 = vperm.slane %v100, 4
    %v680 = vperm.slane %v100, 6
    %v681 = vperm.slane %v101, 0
    %v682 = vperm.slane %v101, 2
    %v683 = vperm.slane %v101, 4
    %v684 = vperm.slane %v101, 6
    %v701 = vperm.slane %v669, 0
    %v702 = vperm.slane %v670, 0
    %v703 = vperm.slane %v671, 0
    %v704 = vperm.slane %v672, 0
    %v705 = vperm.slane %v673, 0
    %v706 = vperm.slane %v674, 0
    %v707 = vperm.slane %v675, 0
    %v708 = vperm.slane %v676, 0
    %v709 = vperm.slane %v677, 0
    %v710 = vperm.slane %v678, 0
    %v711 = vperm.slane %v679, 0
    %v712 = vperm.slane %v680, 0
    %v713 = vperm.slane %v681, 0
    %v714 = vperm.slane %v682, 0
    %v715 = vperm.slane %v683, 0
    %v716 = vperm.slane %v684, 0
    %v717 = vmul.f32 %v601, %v701
    %v718 = vmul.f32 %v602, %v702
    %v719 = vmul.f32 %v603, %v703
    %v720 = vmul.f32 %v604, %v704
    %v721 = vmul.f32 %v605, %v705
    %v722 = vmul.f32 %v606, %v706
    %v723 = vmul.f32 %v607, %v707
    %v724 = vmul.f32 %v608, %v708
    %v725 = vmul.f32 %v609, %v709
    %v726 = vmul.f32 %v610, %v710
    %v727 = vmul.f32 %v611, %v711
    %v728 = vmul.f32 %v612, %v712
    %v729 = vmul.f32 %v613, %v713
    %v730 = vmul.f32 %v614, %v714
    %v731 = vmul.f32 %v615, %v715
    %v732 = vmul.f32 %v616, %v716
    %v733 = vmul.f32 %v617, %v701
    %v734 = vmul.f32 %v618, %v702
    %v735 = vmul.f32 %v619, %v703
    %v736 = vmul.f32 %v620, %v704
    %v737 = vmul.f32 %v621, %v705
    %v738 = vmul.f32 %v622, %v706
    %v739 = vmul.f32 %v623, %v707
    %v740 = vmul.f32 %v624, %v708
    %v741 = vmul.f32 %v625, %v709
    %v742 = vmul.f32 %v626, %v710
    %v743 = vmul.f32 %v627, %v711
    %v744 = vmul.f32 %v628, %v712
    %v745 = vmul.f32 %v629, %v713
    %v746 = vmul.f32 %v630, %v714
    %v747 = vmul.f32 %v631, %v715
    %v748 = vmul.f32 %v632, %v716
    %v749 = vmul.f32 %v633, %v701
    %v750 = vmul.f32 %v634, %v702
    %v751 = vmul.f32 %v635, %v703
    %v752 = vmul.f32 %v636, %v704
    %v753 = vmul.f32 %v637, %v705
    %v754 = vmul.f32 %v638, %v706
    %v755 = vmul.f32 %v639, %v707
    %v756 = vmul.f32 %v640, %v708
    %v757 = vmul.f32 %v641, %v709
    %v758 = vmul.f32 %v642, %v710
    %v759 = vmul.f32 %v643, %v711
    %v760 = vmul.f32 %v644, %v712
    %v761 = vmul.f32 %v645, %v713
    %v762 = vmul.f32 %v646, %v714
    %v763 = vmul.f32 %v647, %v715
    %v764 = vmul.f32 %v648, %v716
    %v765 = vmul.f32 %v649, %v701
    %v766 = vmul.f32 %v650, %v702
    %v767 = vmul.f32 %v651, %v703
    %v768 = vmul.f32 %v652, %v704
    %v769 = vmul.f32 %v653, %v705
    %v770 = vmul.f32 %v654, %v706
    %v771 = vmul.f32 %v655, %v707
    %v772 = vmul.f32 %v656, %v708
    %v773 = vmul.f32 %v657, %v709
    %v774 = vmul.f32 %v658, %v710
    %v775 = vmul.f32 %v659, %v711
    %v776 = vmul.f32 %v660, %v712
    %v777 = vmul.f32 %v661, %v713
    %v778 = vmul.f32 %v662, %v714
    %v779 = vmul.f32 %v663, %v715
    %v780 = vmul.f32 %v664, %v716
    %v781 = vadd.f32 %v717, %v718
    %v782 = vadd.f32 %v781, %v719
    %v783 = vadd.f32 %v782, %v720
    %v784 = vadd.f32 %v783, %v721
    %v785 = vadd.f32 %v784, %v722
    %v786 = vadd.f32 %v785, %v723
    %v787 = vadd.f32 %v786, %v724
    %v788 = vadd.f32 %v787, %v725
    %v789 = vadd.f32 %v788, %v726
    %v790 = vadd.f32 %v789, %v727
    %v791 = vadd.f32 %v790, %v728
    %v792 = vadd.f32 %v791, %v729
    %v793 = vadd.f32 %v792, %v730
    %v794 = vadd.f32 %v793, %v731
    %v795 = vadd.f32 %v794, %v732
    %796 = vadd.xlane.f32.xlu0 %v795
    %v797 = vpop.xlane.xlu0 %796
    %vm798 = vcmask 1041408
    %v799 = vsel %vm798, %v733, 0.0
    %v800 = vsel %vm798, %v734, 0.0
    %v801 = vadd.f32 %v799, %v800
    %v802 = vsel %vm798, %v735, 0.0
    %v803 = vadd.f32 %v801, %v802
    %v804 = vsel %vm798, %v736, 0.0
    %v805 = vadd.f32 %v803, %v804
    %v806 = vsel %vm798, %v737, 0.0
    %v807 = vadd.f32 %v805, %v806
    %v808 = vsel %vm798, %v738, 0.0
    %v809 = vadd.f32 %v807, %v808
    %v810 = vsel %vm798, %v739, 0.0
    %v811 = vadd.f32 %v809, %v810
    %v812 = vsel %vm798, %v740, 0.0
    %v813 = vadd.f32 %v811, %v812
    %v814 = vsel %vm798, %v741, 0.0
    %v815 = vadd.f32 %v813, %v814
    %v816 = vsel %vm798, %v742, 0.0
    %v817 = vadd.f32 %v815, %v816
    %v818 = vsel %vm798, %v743, 0.0
    %v819 = vadd.f32 %v817, %v818
    %v820 = vsel %vm798, %v744, 0.0
    %v821 = vadd.f32 %v819, %v820
    %v822 = vsel %vm798, %v745, 0.0
    %v823 = vadd.f32 %v821, %v822
    %v824 = vsel %vm798, %v746, 0.0
    %v825 = vadd.f32 %v823, %v824
    %v826 = vsel %vm798, %v747, 0.0
    %v827 = vadd.f32 %v825, %v826
    %v828 = vsel %vm798, %v748, 0.0
    %v829 = vadd.f32 %v827, %v828
    %830 = vadd.xlane.f32.xlu0 %v829
    %v831 = vpop.xlane.xlu0 %830
    %v832 = vadd.f32 %v749, %v750
    %v833 = vadd.f32 %v832, %v751
    %v834 = vadd.f32 %v833, %v752
    %v835 = vadd.f32 %v834, %v753
    %v836 = vadd.f32 %v835, %v754
    %v837 = vadd.f32 %v836, %v755
    %v838 = vadd.f32 %v837, %v756
    %v839 = vadd.f32 %v838, %v757
    %v840 = vadd.f32 %v839, %v758
    %v841 = vadd.f32 %v840, %v759
    %v842 = vadd.f32 %v841, %v760
    %v843 = vadd.f32 %v842, %v761
    %v844 = vadd.f32 %v843, %v762
    %v845 = vadd.f32 %v844, %v763
    %v846 = vadd.f32 %v845, %v764
    %847 = vadd.xlane.f32.xlu0 %v846
    %v848 = vpop.xlane.xlu0 %847
    %v849 = vsel %vm798, %v765, 0.0
    %v850 = vsel %vm798, %v766, 0.0
    %v851 = vadd.f32 %v849, %v850
    %v852 = vsel %vm798, %v767, 0.0
    %v853 = vadd.f32 %v851, %v852
    %v854 = vsel %vm798, %v768, 0.0
    %v855 = vadd.f32 %v853, %v854
    %v856 = vsel %vm798, %v769, 0.0
    %v857 = vadd.f32 %v855, %v856
    %v858 = vsel %vm798, %v770, 0.0
    %v859 = vadd.f32 %v857, %v858
    %v860 = vsel %vm798, %v771, 0.0
    %v861 = vadd.f32 %v859, %v860
    %v862 = vsel %vm798, %v772, 0.0
    %v863 = vadd.f32 %v861, %v862
    %v864 = vsel %vm798, %v773, 0.0
    %v865 = vadd.f32 %v863, %v864
    %v866 = vsel %vm798, %v774, 0.0
    %v867 = vadd.f32 %v865, %v866
    %v868 = vsel %vm798, %v775, 0.0
    %v869 = vadd.f32 %v867, %v868
    %v870 = vsel %vm798, %v776, 0.0
    %v871 = vadd.f32 %v869, %v870
    %v872 = vsel %vm798, %v777, 0.0
    %v873 = vadd.f32 %v871, %v872
    %v874 = vsel %vm798, %v778, 0.0
    %v875 = vadd.f32 %v873, %v874
    %v876 = vsel %vm798, %v779, 0.0
    %v877 = vadd.f32 %v875, %v876
    %v878 = vsel %vm798, %v780, 0.0
    %v879 = vadd.f32 %v877, %v878
    %880 = vadd.xlane.f32.xlu0 %v879
    %v881 = vpop.xlane.xlu0 %880
    %882 = vrot.lane.b32.xlu0 %v89, 120
    %v883 = vpop.permute.xlu0 %882
    %s884 = vtos %v883
    %v885 = vstv %s884
    %v887 = vadd.f32 %v797, %v885
    %v888 = vadd.f32 %v831, %v885
    %v889 = vadd.f32 %v848, %v885
    %v890 = vadd.f32 %v881, %v885
    %v895 = vperm.slane %v887, %v316
    %v896 = vperm.slane %v888, %v318
    %v897 = vsel %vm320, %v896, %v895
    %v898 = vperm.slane %v889, %v316
    %v899 = vperm.slane %v890, %v318
    %v900 = vsel %vm320, %v899, %v898
    %v901 = vsel %vm325, %v900, %v897
    %v903 = vadd.f32 %v342, %v901
    %v904 = vsub.f32 %v903, %v903
    %905 = vrot.lane.b32.xlu0 %v89, 117
    %v906 = vpop.permute.xlu0 %905
    %s907 = vtos %v906
    %v908 = vstv %s907
    %v910 = vmul.f32 %v908, %v904
    %v911 = vmul.f32 %v910, 316.22775
    %912 = vrot.lane.b32.xlu0 %v89, 116
    %v913 = vpop.permute.xlu0 %912
    %s914 = vtos %v913
    %v915 = vstv %s914
    %v917 = vadd.f32 %v911, %v915
    %v918 = vadd.f32 %v917, %v88
    %v919 = vrot.slane %v89, 1
    %s920 = vtos %v919
    %v921 = vstv %s920
    %v923 = vmul.f32 %v918, %v921
    %924 = vrot.lane.b32.xlu0 %v919, 125
    %v925 = vpop.permute.xlu0 %924
    %s926 = vtos %v925
    %v927 = vstv %s926
    %v929 = vadd.f32 %v923, %v927
    %930 = vrot.lane.b32.xlu0 %v919, 127
    %v931 = vpop.permute.xlu0 %930
    %s932 = vtos %v931
    %v933 = vstv %s932
    %v935 = vmul.f32 %v918, %v933
    %936 = vrot.lane.b32.xlu0 %v919, 124
    %v937 = vpop.permute.xlu0 %936
    %s938 = vtos %v937
    %v939 = vstv %s938
    %v941 = vadd.f32 %v935, %v939
    %942 = vrot.lane.b32.xlu0 %v919, 126
    %v943 = vpop.permute.xlu0 %942
    %s944 = vtos %v943
    %v945 = vstv %s944
    %v947 = vmul.f32 %v918, %v945
    %948 = vrot.lane.b32.xlu0 %v919, 123
    %v949 = vpop.permute.xlu0 %948
    %s950 = vtos %v949
    %v951 = vstv %s950
    %v953 = vadd.f32 %v947, %v951
    %v954 = vperm.slane %v929, 0
    %v955 = vlaneseq
    %v956 = vshrl.u32 %v955, 7
    %958 = vset.pattern.permute.xlu0 %v956
    %959 = vperm.xlu0 %958, %v954
    %v960 = vpop.permute.xlu0 %959
    %v961 = vlaneseq
    %v962 = vshrl.u32 %v961, 7
    %v963 = vadd.s32 %v962, 8
    %964 = vset.pattern.permute.xlu0 %v963
    %965 = vperm.xlu0 %964, %v954
    %v966 = vpop.permute.xlu0 %965
    %v967 = vperm.slane %v929, 1
    %v968 = vlaneseq
    %v969 = vshrl.u32 %v968, 7
    %971 = vset.pattern.permute.xlu0 %v969
    %972 = vperm.xlu0 %971, %v967
    %v973 = vpop.permute.xlu0 %972
    %v974 = vlaneseq
    %v975 = vshrl.u32 %v974, 7
    %v976 = vadd.s32 %v975, 8
    %977 = vset.pattern.permute.xlu0 %v976
    %978 = vperm.xlu0 %977, %v967
    %v979 = vpop.permute.xlu0 %978
    %v981 = vrot.slane %v941, 1
    %v982 = vperm.slane %v941, 0
    %v983 = vperm.slane %v981, 0
    %v986 = vmul.f32 %v960, %v982
    %v987 = vmul.f32 %v966, %v982
    %v988 = vmul.f32 %v973, %v983
    %v989 = vmul.f32 %v979, %v983
    %v990 = vsel %vm173, %v986, -inf
    %991 = vmax.xlane.f32.xlu0 %v990
    %v992 = vpop.xlane.xlu0 %991
    %v993 = vsel %vm177, %v987, -inf
    %994 = vmax.xlane.f32.xlu0 %v993
    %v995 = vpop.xlane.xlu0 %994
    %v996 = vsel %vm173, %v988, -inf
    %997 = vmax.xlane.f32.xlu0 %v996
    %v998 = vpop.xlane.xlu0 %997
    %v999 = vsel %vm177, %v989, -inf
    %1000 = vmax.xlane.f32.xlu0 %v999
    %v1001 = vpop.xlane.xlu0 %1000
    %v1002 = vsub.f32 %v986, %v992
    %v1003 = vsub.f32 %v987, %v995
    %v1004 = vsub.f32 %v988, %v998
    %v1005 = vsub.f32 %v989, %v1001
    %v1006 = vmul.f32 %v1002, 1.442695
    %v1007 = vpow.pop %v1006
    %v1008 = vmul.f32 %v1003, 1.442695
    %v1009 = vpow.pop %v1008
    %v1010 = vmul.f32 %v1004, 1.442695
    %v1011 = vpow.pop %v1010
    %v1012 = vmul.f32 %v1005, 1.442695
    %v1013 = vpow.pop %v1012
    %v1014 = vsel %vm173, %v1007, 0.0
    %1015 = vadd.xlane.f32.xlu0 %v1014
    %v1016 = vpop.xlane.xlu0 %1015
    %v1017 = vsel %vm177, %v1009, 0.0
    %1018 = vadd.xlane.f32.xlu0 %v1017
    %v1019 = vpop.xlane.xlu0 %1018
    %v1020 = vsel %vm173, %v1011, 0.0
    %1021 = vadd.xlane.f32.xlu0 %v1020
    %v1022 = vpop.xlane.xlu0 %1021
    %v1023 = vsel %vm177, %v1013, 0.0
    %1024 = vadd.xlane.f32.xlu0 %v1023
    %v1025 = vpop.xlane.xlu0 %1024
    %v1026 = vrcp.pop %v1016
    %v1027 = vmul.f32 %v1016, %v1026
    %v1028 = vsub.f32 1.0, %v1027
    %v1029 = vmul.f32 %v1026, %v1028
    %v1030 = vadd.f32 %v1026, %v1029
    %vm1031 = vweird.f32 %v1016
    %vm1032 = vweird.f32 %v1026
    %vm1033 = vmor %vm1031, %vm1032
    %v1034 = vsel %vm1033, %v1026, %v1030
    %v1035 = vand.u32 2147483647, %v1016
    %vm1036 = vcmp.eq.f32.partialorder %v1035, 8.507059e+37
    %v1037 = vand.u32 %v1016, 2147483648
    %v1038 = vor.u32 1.1754944e-38, %v1037
    %v1039 = vsel %vm1036, %v1038, %v1034
    %v1040 = vmul.f32 %v1007, %v1039
    %v1041 = vrcp.pop %v1019
    %v1042 = vmul.f32 %v1019, %v1041
    %v1043 = vsub.f32 1.0, %v1042
    %v1044 = vmul.f32 %v1041, %v1043
    %v1045 = vadd.f32 %v1041, %v1044
    %vm1046 = vweird.f32 %v1019
    %vm1047 = vweird.f32 %v1041
    %vm1048 = vmor %vm1046, %vm1047
    %v1049 = vsel %vm1048, %v1041, %v1045
    %v1050 = vand.u32 2147483647, %v1019
    %vm1051 = vcmp.eq.f32.partialorder %v1050, 8.507059e+37
    %v1052 = vand.u32 %v1019, 2147483648
    %v1053 = vor.u32 1.1754944e-38, %v1052
    %v1054 = vsel %vm1051, %v1053, %v1049
    %v1055 = vmul.f32 %v1009, %v1054
    %v1056 = vrcp.pop %v1022
    %v1057 = vmul.f32 %v1022, %v1056
    %v1058 = vsub.f32 1.0, %v1057
    %v1059 = vmul.f32 %v1056, %v1058
    %v1060 = vadd.f32 %v1056, %v1059
    %vm1061 = vweird.f32 %v1022
    %vm1062 = vweird.f32 %v1056
    %vm1063 = vmor %vm1061, %vm1062
    %v1064 = vsel %vm1063, %v1056, %v1060
    %v1065 = vand.u32 2147483647, %v1022
    %vm1066 = vcmp.eq.f32.partialorder %v1065, 8.507059e+37
    %v1067 = vand.u32 %v1022, 2147483648
    %v1068 = vor.u32 1.1754944e-38, %v1067
    %v1069 = vsel %vm1066, %v1068, %v1064
    %v1070 = vmul.f32 %v1011, %v1069
    %v1071 = vrcp.pop %v1025
    %v1072 = vmul.f32 %v1025, %v1071
    %v1073 = vsub.f32 1.0, %v1072
    %v1074 = vmul.f32 %v1071, %v1073
    %v1075 = vadd.f32 %v1071, %v1074
    %vm1076 = vweird.f32 %v1025
    %vm1077 = vweird.f32 %v1071
    %vm1078 = vmor %vm1076, %vm1077
    %v1079 = vsel %vm1078, %v1071, %v1075
    %v1080 = vand.u32 2147483647, %v1025
    %vm1081 = vcmp.eq.f32.partialorder %v1080, 8.507059e+37
    %v1082 = vand.u32 %v1025, 2147483648
    %v1083 = vor.u32 1.1754944e-38, %v1082
    %v1084 = vsel %vm1081, %v1083, %v1079
    %v1085 = vmul.f32 %v1013, %v1084
    %v1087 = vrot.slane %v953, 1
    %v1088 = vperm.slane %v953, 0
    %v1089 = vperm.slane %v1087, 0
    %v1092 = vmul.f32 %v1040, %v1088
    %v1093 = vmul.f32 %v1055, %v1088
    %v1094 = vmul.f32 %v1070, %v1089
    %v1095 = vmul.f32 %v1085, %v1089
    %v1096 = vsel %vm173, %v1092, 0.0
    %1097 = vadd.xlane.f32.xlu0 %v1096
    %v1098 = vpop.xlane.xlu0 %1097
    %v1099 = vsel %vm177, %v1093, 0.0
    %1100 = vadd.xlane.f32.xlu0 %v1099
    %v1101 = vpop.xlane.xlu0 %1100
    %v1102 = vsel %vm173, %v1094, 0.0
    %1103 = vadd.xlane.f32.xlu0 %v1102
    %v1104 = vpop.xlane.xlu0 %1103
    %v1105 = vsel %vm177, %v1095, 0.0
    %1106 = vadd.xlane.f32.xlu0 %v1105
    %v1107 = vpop.xlane.xlu0 %1106
    %1108 = vrot.lane.b32.xlu0 %v919, 122
    %v1109 = vpop.permute.xlu0 %1108
    %s1110 = vtos %v1109
    %v1111 = vstv %s1110
    %v1113 = vmul.f32 %v1098, %v1111
    %v1114 = vmul.f32 %v1101, %v1111
    %v1115 = vmul.f32 %v1104, %v1111
    %v1116 = vmul.f32 %v1107, %v1111
    %1117 = vrot.lane.b32.xlu0 %v919, 121
    %v1118 = vpop.permute.xlu0 %1117
    %s1119 = vtos %v1118
    %v1120 = vstv %s1119
    %v1122 = vadd.f32 %v1113, %v1120
    %v1123 = vadd.f32 %v1114, %v1120
    %v1124 = vadd.f32 %v1115, %v1120
    %v1125 = vadd.f32 %v1116, %v1120
    %v1130 = vperm.slane %v1122, %v316
    %v1131 = vperm.slane %v1123, %v318
    %v1132 = vsel %vm320, %v1131, %v1130
    %v1133 = vperm.slane %v1124, %v316
    %v1134 = vperm.slane %v1125, %v318
    %v1135 = vsel %vm320, %v1134, %v1133
    %v1136 = vsel %vm325, %v1135, %v1132
    %v1138 = vadd.f32 %v918, %v1136
    %v1139 = vsub.f32 %v1138, %v1138
    %1140 = vrot.lane.b32.xlu0 %v919, 119
    %v1141 = vpop.permute.xlu0 %1140
    %s1142 = vtos %v1141
    %v1143 = vstv %s1142
    %v1145 = vmul.f32 %v1143, %v1139
    %v1146 = vmul.f32 %v1145, 316.22775
    %1147 = vrot.lane.b32.xlu0 %v919, 118
    %v1148 = vpop.permute.xlu0 %1147
    %s1149 = vtos %v1148
    %v1150 = vstv %s1149
    %v1152 = vadd.f32 %v1146, %v1150
    %v1153 = vperm.slane %v1152, 0
    %v1154 = vlaneseq
    %v1155 = vshrl.u32 %v1154, 7
    %1157 = vset.pattern.permute.xlu0 %v1155
    %1158 = vperm.xlu0 %1157, %v1153
    %v1159 = vpop.permute.xlu0 %1158
    %v1160 = vlaneseq
    %v1161 = vshrl.u32 %v1160, 7
    %v1162 = vadd.s32 %v1161, 8
    %1163 = vset.pattern.permute.xlu0 %v1162
    %1164 = vperm.xlu0 %1163, %v1153
    %v1165 = vpop.permute.xlu0 %1164
    %v1166 = vperm.slane %v1152, 1
    %v1167 = vlaneseq
    %v1168 = vshrl.u32 %v1167, 7
    %1170 = vset.pattern.permute.xlu0 %v1168
    %1171 = vperm.xlu0 %1170, %v1166
    %v1172 = vpop.permute.xlu0 %1171
    %v1173 = vlaneseq
    %v1174 = vshrl.u32 %v1173, 7
    %v1175 = vadd.s32 %v1174, 8
    %1176 = vset.pattern.permute.xlu0 %v1175
    %1177 = vperm.xlu0 %1176, %v1166
    %v1178 = vpop.permute.xlu0 %1177
    %v1179 = vperm.slane %v90, 1
    %v1180 = vperm.slane %v90, 3
    %v1181 = vperm.slane %v90, 5
    %v1182 = vperm.slane %v90, 7
    %v1183 = vperm.slane %v91, 1
    %v1184 = vperm.slane %v91, 3
    %v1185 = vperm.slane %v91, 5
    %v1186 = vperm.slane %v91, 7
    %v1187 = vperm.slane %v92, 1
    %v1188 = vperm.slane %v92, 3
    %v1189 = vperm.slane %v92, 5
    %v1190 = vperm.slane %v92, 7
    %v1191 = vperm.slane %v93, 1
    %v1192 = vperm.slane %v93, 3
    %v1193 = vperm.slane %v93, 5
    %v1194 = vperm.slane %v93, 7
    %v1211 = vperm.slane %v1179, 1
    %v1212 = vperm.slane %v1180, 1
    %v1213 = vperm.slane %v1181, 1
    %v1214 = vperm.slane %v1182, 1
    %v1215 = vperm.slane %v1183, 1
    %v1216 = vperm.slane %v1184, 1
    %v1217 = vperm.slane %v1185, 1
    %v1218 = vperm.slane %v1186, 1
    %v1219 = vperm.slane %v1187, 1
    %v1220 = vperm.slane %v1188, 1
    %v1221 = vperm.slane %v1189, 1
    %v1222 = vperm.slane %v1190, 1
    %v1223 = vperm.slane %v1191, 1
    %v1224 = vperm.slane %v1192, 1
    %v1225 = vperm.slane %v1193, 1
    %v1226 = vperm.slane %v1194, 1
    %v1227 = vmul.f32 %v1159, %v1211
    %v1228 = vmul.f32 %v1159, %v1212
    %v1229 = vmul.f32 %v1159, %v1213
    %v1230 = vmul.f32 %v1159, %v1214
    %v1231 = vmul.f32 %v1159, %v1215
    %v1232 = vmul.f32 %v1159, %v1216
    %v1233 = vmul.f32 %v1159, %v1217
    %v1234 = vmul.f32 %v1159, %v1218
    %v1235 = vmul.f32 %v1159, %v1219
    %v1236 = vmul.f32 %v1159, %v1220
    %v1237 = vmul.f32 %v1159, %v1221
    %v1238 = vmul.f32 %v1159, %v1222
    %v1239 = vmul.f32 %v1159, %v1223
    %v1240 = vmul.f32 %v1159, %v1224
    %v1241 = vmul.f32 %v1159, %v1225
    %v1242 = vmul.f32 %v1159, %v1226
    %v1243 = vmul.f32 %v1165, %v1211
    %v1244 = vmul.f32 %v1165, %v1212
    %v1245 = vmul.f32 %v1165, %v1213
    %v1246 = vmul.f32 %v1165, %v1214
    %v1247 = vmul.f32 %v1165, %v1215
    %v1248 = vmul.f32 %v1165, %v1216
    %v1249 = vmul.f32 %v1165, %v1217
    %v1250 = vmul.f32 %v1165, %v1218
    %v1251 = vmul.f32 %v1165, %v1219
    %v1252 = vmul.f32 %v1165, %v1220
    %v1253 = vmul.f32 %v1165, %v1221
    %v1254 = vmul.f32 %v1165, %v1222
    %v1255 = vmul.f32 %v1165, %v1223
    %v1256 = vmul.f32 %v1165, %v1224
    %v1257 = vmul.f32 %v1165, %v1225
    %v1258 = vmul.f32 %v1165, %v1226
    %v1259 = vmul.f32 %v1172, %v1211
    %v1260 = vmul.f32 %v1172, %v1212
    %v1261 = vmul.f32 %v1172, %v1213
    %v1262 = vmul.f32 %v1172, %v1214
    %v1263 = vmul.f32 %v1172, %v1215
    %v1264 = vmul.f32 %v1172, %v1216
    %v1265 = vmul.f32 %v1172, %v1217
    %v1266 = vmul.f32 %v1172, %v1218
    %v1267 = vmul.f32 %v1172, %v1219
    %v1268 = vmul.f32 %v1172, %v1220
    %v1269 = vmul.f32 %v1172, %v1221
    %v1270 = vmul.f32 %v1172, %v1222
    %v1271 = vmul.f32 %v1172, %v1223
    %v1272 = vmul.f32 %v1172, %v1224
    %v1273 = vmul.f32 %v1172, %v1225
    %v1274 = vmul.f32 %v1172, %v1226
    %v1275 = vmul.f32 %v1178, %v1211
    %v1276 = vmul.f32 %v1178, %v1212
    %v1277 = vmul.f32 %v1178, %v1213
    %v1278 = vmul.f32 %v1178, %v1214
    %v1279 = vmul.f32 %v1178, %v1215
    %v1280 = vmul.f32 %v1178, %v1216
    %v1281 = vmul.f32 %v1178, %v1217
    %v1282 = vmul.f32 %v1178, %v1218
    %v1283 = vmul.f32 %v1178, %v1219
    %v1284 = vmul.f32 %v1178, %v1220
    %v1285 = vmul.f32 %v1178, %v1221
    %v1286 = vmul.f32 %v1178, %v1222
    %v1287 = vmul.f32 %v1178, %v1223
    %v1288 = vmul.f32 %v1178, %v1224
    %v1289 = vmul.f32 %v1178, %v1225
    %v1290 = vmul.f32 %v1178, %v1226
    %v1291 = vperm.slane %v94, 1
    %v1292 = vperm.slane %v94, 3
    %v1293 = vperm.slane %v94, 5
    %v1294 = vperm.slane %v94, 7
    %v1295 = vperm.slane %v95, 1
    %v1296 = vperm.slane %v95, 3
    %v1297 = vperm.slane %v95, 5
    %v1298 = vperm.slane %v95, 7
    %v1299 = vperm.slane %v96, 1
    %v1300 = vperm.slane %v96, 3
    %v1301 = vperm.slane %v96, 5
    %v1302 = vperm.slane %v96, 7
    %v1303 = vperm.slane %v97, 1
    %v1304 = vperm.slane %v97, 3
    %v1305 = vperm.slane %v97, 5
    %v1306 = vperm.slane %v97, 7
    %v1323 = vperm.slane %v1291, 1
    %v1324 = vperm.slane %v1292, 1
    %v1325 = vperm.slane %v1293, 1
    %v1326 = vperm.slane %v1294, 1
    %v1327 = vperm.slane %v1295, 1
    %v1328 = vperm.slane %v1296, 1
    %v1329 = vperm.slane %v1297, 1
    %v1330 = vperm.slane %v1298, 1
    %v1331 = vperm.slane %v1299, 1
    %v1332 = vperm.slane %v1300, 1
    %v1333 = vperm.slane %v1301, 1
    %v1334 = vperm.slane %v1302, 1
    %v1335 = vperm.slane %v1303, 1
    %v1336 = vperm.slane %v1304, 1
    %v1337 = vperm.slane %v1305, 1
    %v1338 = vperm.slane %v1306, 1
    %v1339 = vadd.f32 %v1227, %v1323
    %v1340 = vadd.f32 %v1228, %v1324
    %v1341 = vadd.f32 %v1229, %v1325
    %v1342 = vadd.f32 %v1230, %v1326
    %v1343 = vadd.f32 %v1231, %v1327
    %v1344 = vadd.f32 %v1232, %v1328
    %v1345 = vadd.f32 %v1233, %v1329
    %v1346 = vadd.f32 %v1234, %v1330
    %v1347 = vadd.f32 %v1235, %v1331
    %v1348 = vadd.f32 %v1236, %v1332
    %v1349 = vadd.f32 %v1237, %v1333
    %v1350 = vadd.f32 %v1238, %v1334
    %v1351 = vadd.f32 %v1239, %v1335
    %v1352 = vadd.f32 %v1240, %v1336
    %v1353 = vadd.f32 %v1241, %v1337
    %v1354 = vadd.f32 %v1242, %v1338
    %v1355 = vadd.f32 %v1243, %v1323
    %v1356 = vadd.f32 %v1244, %v1324
    %v1357 = vadd.f32 %v1245, %v1325
    %v1358 = vadd.f32 %v1246, %v1326
    %v1359 = vadd.f32 %v1247, %v1327
    %v1360 = vadd.f32 %v1248, %v1328
    %v1361 = vadd.f32 %v1249, %v1329
    %v1362 = vadd.f32 %v1250, %v1330
    %v1363 = vadd.f32 %v1251, %v1331
    %v1364 = vadd.f32 %v1252, %v1332
    %v1365 = vadd.f32 %v1253, %v1333
    %v1366 = vadd.f32 %v1254, %v1334
    %v1367 = vadd.f32 %v1255, %v1335
    %v1368 = vadd.f32 %v1256, %v1336
    %v1369 = vadd.f32 %v1257, %v1337
    %v1370 = vadd.f32 %v1258, %v1338
    %v1371 = vadd.f32 %v1259, %v1323
    %v1372 = vadd.f32 %v1260, %v1324
    %v1373 = vadd.f32 %v1261, %v1325
    %v1374 = vadd.f32 %v1262, %v1326
    %v1375 = vadd.f32 %v1263, %v1327
    %v1376 = vadd.f32 %v1264, %v1328
    %v1377 = vadd.f32 %v1265, %v1329
    %v1378 = vadd.f32 %v1266, %v1330
    %v1379 = vadd.f32 %v1267, %v1331
    %v1380 = vadd.f32 %v1268, %v1332
    %v1381 = vadd.f32 %v1269, %v1333
    %v1382 = vadd.f32 %v1270, %v1334
    %v1383 = vadd.f32 %v1271, %v1335
    %v1384 = vadd.f32 %v1272, %v1336
    %v1385 = vadd.f32 %v1273, %v1337
    %v1386 = vadd.f32 %v1274, %v1338
    %v1387 = vadd.f32 %v1275, %v1323
    %v1388 = vadd.f32 %v1276, %v1324
    %v1389 = vadd.f32 %v1277, %v1325
    %v1390 = vadd.f32 %v1278, %v1326
    %v1391 = vadd.f32 %v1279, %v1327
    %v1392 = vadd.f32 %v1280, %v1328
    %v1393 = vadd.f32 %v1281, %v1329
    %v1394 = vadd.f32 %v1282, %v1330
    %v1395 = vadd.f32 %v1283, %v1331
    %v1396 = vadd.f32 %v1284, %v1332
    %v1397 = vadd.f32 %v1285, %v1333
    %v1398 = vadd.f32 %v1286, %v1334
    %v1399 = vadd.f32 %v1287, %v1335
    %v1400 = vadd.f32 %v1288, %v1336
    %v1401 = vadd.f32 %v1289, %v1337
    %v1402 = vadd.f32 %v1290, %v1338
    %v1403 = vmax.f32 %v1339, 0.0
    %v1404 = vmax.f32 %v1340, 0.0
    %v1405 = vmax.f32 %v1341, 0.0
    %v1406 = vmax.f32 %v1342, 0.0
    %v1407 = vmax.f32 %v1343, 0.0
    %v1408 = vmax.f32 %v1344, 0.0
    %v1409 = vmax.f32 %v1345, 0.0
    %v1410 = vmax.f32 %v1346, 0.0
    %v1411 = vmax.f32 %v1347, 0.0
    %v1412 = vmax.f32 %v1348, 0.0
    %v1413 = vmax.f32 %v1349, 0.0
    %v1414 = vmax.f32 %v1350, 0.0
    %v1415 = vmax.f32 %v1351, 0.0
    %v1416 = vmax.f32 %v1352, 0.0
    %v1417 = vmax.f32 %v1353, 0.0
    %v1418 = vmax.f32 %v1354, 0.0
    %v1419 = vmax.f32 %v1355, 0.0
    %v1420 = vmax.f32 %v1356, 0.0
    %v1421 = vmax.f32 %v1357, 0.0
    %v1422 = vmax.f32 %v1358, 0.0
    %v1423 = vmax.f32 %v1359, 0.0
    %v1424 = vmax.f32 %v1360, 0.0
    %v1425 = vmax.f32 %v1361, 0.0
    %v1426 = vmax.f32 %v1362, 0.0
    %v1427 = vmax.f32 %v1363, 0.0
    %v1428 = vmax.f32 %v1364, 0.0
    %v1429 = vmax.f32 %v1365, 0.0
    %v1430 = vmax.f32 %v1366, 0.0
    %v1431 = vmax.f32 %v1367, 0.0
    %v1432 = vmax.f32 %v1368, 0.0
    %v1433 = vmax.f32 %v1369, 0.0
    %v1434 = vmax.f32 %v1370, 0.0
    %v1435 = vmax.f32 %v1371, 0.0
    %v1436 = vmax.f32 %v1372, 0.0
    %v1437 = vmax.f32 %v1373, 0.0
    %v1438 = vmax.f32 %v1374, 0.0
    %v1439 = vmax.f32 %v1375, 0.0
    %v1440 = vmax.f32 %v1376, 0.0
    %v1441 = vmax.f32 %v1377, 0.0
    %v1442 = vmax.f32 %v1378, 0.0
    %v1443 = vmax.f32 %v1379, 0.0
    %v1444 = vmax.f32 %v1380, 0.0
    %v1445 = vmax.f32 %v1381, 0.0
    %v1446 = vmax.f32 %v1382, 0.0
    %v1447 = vmax.f32 %v1383, 0.0
    %v1448 = vmax.f32 %v1384, 0.0
    %v1449 = vmax.f32 %v1385, 0.0
    %v1450 = vmax.f32 %v1386, 0.0
    %v1451 = vmax.f32 %v1387, 0.0
    %v1452 = vmax.f32 %v1388, 0.0
    %v1453 = vmax.f32 %v1389, 0.0
    %v1454 = vmax.f32 %v1390, 0.0
    %v1455 = vmax.f32 %v1391, 0.0
    %v1456 = vmax.f32 %v1392, 0.0
    %v1457 = vmax.f32 %v1393, 0.0
    %v1458 = vmax.f32 %v1394, 0.0
    %v1459 = vmax.f32 %v1395, 0.0
    %v1460 = vmax.f32 %v1396, 0.0
    %v1461 = vmax.f32 %v1397, 0.0
    %v1462 = vmax.f32 %v1398, 0.0
    %v1463 = vmax.f32 %v1399, 0.0
    %v1464 = vmax.f32 %v1400, 0.0
    %v1465 = vmax.f32 %v1401, 0.0
    %v1466 = vmax.f32 %v1402, 0.0
    %v1467 = vperm.slane %v98, 1
    %v1468 = vperm.slane %v98, 3
    %v1469 = vperm.slane %v98, 5
    %v1470 = vperm.slane %v98, 7
    %v1471 = vperm.slane %v99, 1
    %v1472 = vperm.slane %v99, 3
    %v1473 = vperm.slane %v99, 5
    %v1474 = vperm.slane %v99, 7
    %v1475 = vperm.slane %v100, 1
    %v1476 = vperm.slane %v100, 3
    %v1477 = vperm.slane %v100, 5
    %v1478 = vperm.slane %v100, 7
    %v1479 = vperm.slane %v101, 1
    %v1480 = vperm.slane %v101, 3
    %v1481 = vperm.slane %v101, 5
    %v1482 = vperm.slane %v101, 7
    %v1499 = vperm.slane %v1467, 1
    %v1500 = vperm.slane %v1468, 1
    %v1501 = vperm.slane %v1469, 1
    %v1502 = vperm.slane %v1470, 1
    %v1503 = vperm.slane %v1471, 1
    %v1504 = vperm.slane %v1472, 1
    %v1505 = vperm.slane %v1473, 1
    %v1506 = vperm.slane %v1474, 1
    %v1507 = vperm.slane %v1475, 1
    %v1508 = vperm.slane %v1476, 1
    %v1509 = vperm.slane %v1477, 1
    %v1510 = vperm.slane %v1478, 1
    %v1511 = vperm.slane %v1479, 1
    %v1512 = vperm.slane %v1480, 1
    %v1513 = vperm.slane %v1481, 1
    %v1514 = vperm.slane %v1482, 1
    %v1515 = vmul.f32 %v1403, %v1499
    %v1516 = vmul.f32 %v1404, %v1500
    %v1517 = vmul.f32 %v1405, %v1501
    %v1518 = vmul.f32 %v1406, %v1502
    %v1519 = vmul.f32 %v1407, %v1503
    %v1520 = vmul.f32 %v1408, %v1504
    %v1521 = vmul.f32 %v1409, %v1505
    %v1522 = vmul.f32 %v1410, %v1506
    %v1523 = vmul.f32 %v1411, %v1507
    %v1524 = vmul.f32 %v1412, %v1508
    %v1525 = vmul.f32 %v1413, %v1509
    %v1526 = vmul.f32 %v1414, %v1510
    %v1527 = vmul.f32 %v1415, %v1511
    %v1528 = vmul.f32 %v1416, %v1512
    %v1529 = vmul.f32 %v1417, %v1513
    %v1530 = vmul.f32 %v1418, %v1514
    %v1531 = vmul.f32 %v1419, %v1499
    %v1532 = vmul.f32 %v1420, %v1500
    %v1533 = vmul.f32 %v1421, %v1501
    %v1534 = vmul.f32 %v1422, %v1502
    %v1535 = vmul.f32 %v1423, %v1503
    %v1536 = vmul.f32 %v1424, %v1504
    %v1537 = vmul.f32 %v1425, %v1505
    %v1538 = vmul.f32 %v1426, %v1506
    %v1539 = vmul.f32 %v1427, %v1507
    %v1540 = vmul.f32 %v1428, %v1508
    %v1541 = vmul.f32 %v1429, %v1509
    %v1542 = vmul.f32 %v1430, %v1510
    %v1543 = vmul.f32 %v1431, %v1511
    %v1544 = vmul.f32 %v1432, %v1512
    %v1545 = vmul.f32 %v1433, %v1513
    %v1546 = vmul.f32 %v1434, %v1514
    %v1547 = vmul.f32 %v1435, %v1499
    %v1548 = vmul.f32 %v1436, %v1500
    %v1549 = vmul.f32 %v1437, %v1501
    %v1550 = vmul.f32 %v1438, %v1502
    %v1551 = vmul.f32 %v1439, %v1503
    %v1552 = vmul.f32 %v1440, %v1504
    %v1553 = vmul.f32 %v1441, %v1505
    %v1554 = vmul.f32 %v1442, %v1506
    %v1555 = vmul.f32 %v1443, %v1507
    %v1556 = vmul.f32 %v1444, %v1508
    %v1557 = vmul.f32 %v1445, %v1509
    %v1558 = vmul.f32 %v1446, %v1510
    %v1559 = vmul.f32 %v1447, %v1511
    %v1560 = vmul.f32 %v1448, %v1512
    %v1561 = vmul.f32 %v1449, %v1513
    %v1562 = vmul.f32 %v1450, %v1514
    %v1563 = vmul.f32 %v1451, %v1499
    %v1564 = vmul.f32 %v1452, %v1500
    %v1565 = vmul.f32 %v1453, %v1501
    %v1566 = vmul.f32 %v1454, %v1502
    %v1567 = vmul.f32 %v1455, %v1503
    %v1568 = vmul.f32 %v1456, %v1504
    %v1569 = vmul.f32 %v1457, %v1505
    %v1570 = vmul.f32 %v1458, %v1506
    %v1571 = vmul.f32 %v1459, %v1507
    %v1572 = vmul.f32 %v1460, %v1508
    %v1573 = vmul.f32 %v1461, %v1509
    %v1574 = vmul.f32 %v1462, %v1510
    %v1575 = vmul.f32 %v1463, %v1511
    %v1576 = vmul.f32 %v1464, %v1512
    %v1577 = vmul.f32 %v1465, %v1513
    %v1578 = vmul.f32 %v1466, %v1514
    %v1579 = vadd.f32 %v1515, %v1516
    %v1580 = vadd.f32 %v1579, %v1517
    %v1581 = vadd.f32 %v1580, %v1518
    %v1582 = vadd.f32 %v1581, %v1519
    %v1583 = vadd.f32 %v1582, %v1520
    %v1584 = vadd.f32 %v1583, %v1521
    %v1585 = vadd.f32 %v1584, %v1522
    %v1586 = vadd.f32 %v1585, %v1523
    %v1587 = vadd.f32 %v1586, %v1524
    %v1588 = vadd.f32 %v1587, %v1525
    %v1589 = vadd.f32 %v1588, %v1526
    %v1590 = vadd.f32 %v1589, %v1527
    %v1591 = vadd.f32 %v1590, %v1528
    %v1592 = vadd.f32 %v1591, %v1529
    %v1593 = vadd.f32 %v1592, %v1530
    %1594 = vadd.xlane.f32.xlu0 %v1593
    %v1595 = vpop.xlane.xlu0 %1594
    %v1596 = vsel %vm798, %v1531, 0.0
    %v1597 = vsel %vm798, %v1532, 0.0
    %v1598 = vadd.f32 %v1596, %v1597
    %v1599 = vsel %vm798, %v1533, 0.0
    %v1600 = vadd.f32 %v1598, %v1599
    %v1601 = vsel %vm798, %v1534, 0.0
    %v1602 = vadd.f32 %v1600, %v1601
    %v1603 = vsel %vm798, %v1535, 0.0
    %v1604 = vadd.f32 %v1602, %v1603
    %v1605 = vsel %vm798, %v1536, 0.0
    %v1606 = vadd.f32 %v1604, %v1605
    %v1607 = vsel %vm798, %v1537, 0.0
    %v1608 = vadd.f32 %v1606, %v1607
    %v1609 = vsel %vm798, %v1538, 0.0
    %v1610 = vadd.f32 %v1608, %v1609
    %v1611 = vsel %vm798, %v1539, 0.0
    %v1612 = vadd.f32 %v1610, %v1611
    %v1613 = vsel %vm798, %v1540, 0.0
    %v1614 = vadd.f32 %v1612, %v1613
    %v1615 = vsel %vm798, %v1541, 0.0
    %v1616 = vadd.f32 %v1614, %v1615
    %v1617 = vsel %vm798, %v1542, 0.0
    %v1618 = vadd.f32 %v1616, %v1617
    %v1619 = vsel %vm798, %v1543, 0.0
    %v1620 = vadd.f32 %v1618, %v1619
    %v1621 = vsel %vm798, %v1544, 0.0
    %v1622 = vadd.f32 %v1620, %v1621
    %v1623 = vsel %vm798, %v1545, 0.0
    %v1624 = vadd.f32 %v1622, %v1623
    %v1625 = vsel %vm798, %v1546, 0.0
    %v1626 = vadd.f32 %v1624, %v1625
    %1627 = vadd.xlane.f32.xlu0 %v1626
    %v1628 = vpop.xlane.xlu0 %1627
    %v1629 = vadd.f32 %v1547, %v1548
    %v1630 = vadd.f32 %v1629, %v1549
    %v1631 = vadd.f32 %v1630, %v1550
    %v1632 = vadd.f32 %v1631, %v1551
    %v1633 = vadd.f32 %v1632, %v1552
    %v1634 = vadd.f32 %v1633, %v1553
    %v1635 = vadd.f32 %v1634, %v1554
    %v1636 = vadd.f32 %v1635, %v1555
    %v1637 = vadd.f32 %v1636, %v1556
    %v1638 = vadd.f32 %v1637, %v1557
    %v1639 = vadd.f32 %v1638, %v1558
    %v1640 = vadd.f32 %v1639, %v1559
    %v1641 = vadd.f32 %v1640, %v1560
    %v1642 = vadd.f32 %v1641, %v1561
    %v1643 = vadd.f32 %v1642, %v1562
    %1644 = vadd.xlane.f32.xlu0 %v1643
    %v1645 = vpop.xlane.xlu0 %1644
    %v1646 = vsel %vm798, %v1563, 0.0
    %v1647 = vsel %vm798, %v1564, 0.0
    %v1648 = vadd.f32 %v1646, %v1647
    %v1649 = vsel %vm798, %v1565, 0.0
    %v1650 = vadd.f32 %v1648, %v1649
    %v1651 = vsel %vm798, %v1566, 0.0
    %v1652 = vadd.f32 %v1650, %v1651
    %v1653 = vsel %vm798, %v1567, 0.0
    %v1654 = vadd.f32 %v1652, %v1653
    %v1655 = vsel %vm798, %v1568, 0.0
    %v1656 = vadd.f32 %v1654, %v1655
    %v1657 = vsel %vm798, %v1569, 0.0
    %v1658 = vadd.f32 %v1656, %v1657
    %v1659 = vsel %vm798, %v1570, 0.0
    %v1660 = vadd.f32 %v1658, %v1659
    %v1661 = vsel %vm798, %v1571, 0.0
    %v1662 = vadd.f32 %v1660, %v1661
    %v1663 = vsel %vm798, %v1572, 0.0
    %v1664 = vadd.f32 %v1662, %v1663
    %v1665 = vsel %vm798, %v1573, 0.0
    %v1666 = vadd.f32 %v1664, %v1665
    %v1667 = vsel %vm798, %v1574, 0.0
    %v1668 = vadd.f32 %v1666, %v1667
    %v1669 = vsel %vm798, %v1575, 0.0
    %v1670 = vadd.f32 %v1668, %v1669
    %v1671 = vsel %vm798, %v1576, 0.0
    %v1672 = vadd.f32 %v1670, %v1671
    %v1673 = vsel %vm798, %v1577, 0.0
    %v1674 = vadd.f32 %v1672, %v1673
    %v1675 = vsel %vm798, %v1578, 0.0
    %v1676 = vadd.f32 %v1674, %v1675
    %1677 = vadd.xlane.f32.xlu0 %v1676
    %v1678 = vpop.xlane.xlu0 %1677
    %1679 = vrot.lane.b32.xlu0 %v919, 120
    %v1680 = vpop.permute.xlu0 %1679
    %s1681 = vtos %v1680
    %v1682 = vstv %s1681
    %v1684 = vadd.f32 %v1595, %v1682
    %v1685 = vadd.f32 %v1628, %v1682
    %v1686 = vadd.f32 %v1645, %v1682
    %v1687 = vadd.f32 %v1678, %v1682
    %v1692 = vperm.slane %v1684, %v316
    %v1693 = vperm.slane %v1685, %v318
    %v1694 = vsel %vm320, %v1693, %v1692
    %v1695 = vperm.slane %v1686, %v316
    %v1696 = vperm.slane %v1687, %v318
    %v1697 = vsel %vm320, %v1696, %v1695
    %v1698 = vsel %vm325, %v1697, %v1694
    %v1700 = vadd.f32 %v1152, %v1698
    %v1701 = vsub.f32 %v1700, %v1700
    %1702 = vrot.lane.b32.xlu0 %v919, 117
    %v1703 = vpop.permute.xlu0 %1702
    %s1704 = vtos %v1703
    %v1705 = vstv %s1704
    %v1707 = vmul.f32 %v1705, %v1701
    %v1708 = vmul.f32 %v1707, 316.22775
    %1709 = vrot.lane.b32.xlu0 %v919, 116
    %v1710 = vpop.permute.xlu0 %1709
    %s1711 = vtos %v1710
    %v1712 = vstv %s1711
    %v1714 = vadd.f32 %v1708, %v1712
    %v1715 = vadd.f32 %v1714, %v918
    %v1716 = vld [vmem:[%s5] sm:$0xff]
    %v1717 = vld [vmem:[%s5 + $0x8] sm:$0x3]
    %v1718 = vld [vmem:[%s6] sm:$0x1]
    %v1720 = vperm.slane %v1718, 0
    %v1723 = vsel %vm173, %v1715, 0
    %v1726 = vsel %vm798, %v1717, 0
    %1728 = vmatpush.msra.mxu0 0.0
    %1729 = vmatpush.msra.mxu0 0.0
    %1730 = vmatpush.msra.mxu0 0.0
    %1731 = vmatpush.msra.mxu0 0.0
    %1732 = vmatpush.msra.mxu0 0.0
    %1733 = vmatpush.msra.mxu0 0.0
    %1734 = vmatpush.msra.mxu0 0.0
    %1735 = vmatpush.msra.mxu0 0.0
    %1736 = vmatpush.msra.mxu0 0.0
    %1737 = vmatpush.msra.mxu0 0.0
    %1738 = vmatpush.msra.mxu0 0.0
    %1739 = vmatpush.msra.mxu0 0.0
    %1740 = vmatpush.msra.mxu0 0.0
    %1741 = vmatpush.msra.mxu0 0.0
    %1742 = vmatpush.msra.mxu0 %v1726
    %1743 = vmatpush.msra.mxu0 %v1716
    %1744 = vmatmul.f32.gmra.mxu0 %v1723
    %v1745 = vpop.f32.mrf.mxu0
    %v1746 = vadd.f32 %v1720, %v1745
    %1747 = vdwg.mxu0
    %v1748 = vmax.f32 %v1746, 0.0
    %v1749 = vld [vmem:[%s7] sm:$0xff]
    %v1750 = vld [vmem:[%s7 + $0x8] sm:$0x3]
    %v1751 = vld [vmem:[%s8] sm:$0x1]
    %v1753 = vperm.slane %v1751, 0
    %v1756 = vsel %vm173, %v1748, 0
    %v1759 = vsel %vm798, %v1750, 0
    %1761 = vmatpush.msra.mxu0 0.0
    %1762 = vmatpush.msra.mxu0 0.0
    %1763 = vmatpush.msra.mxu0 0.0
    %1764 = vmatpush.msra.mxu0 0.0
    %1765 = vmatpush.msra.mxu0 0.0
    %1766 = vmatpush.msra.mxu0 0.0
    %1767 = vmatpush.msra.mxu0 0.0
    %1768 = vmatpush.msra.mxu0 0.0
    %1769 = vmatpush.msra.mxu0 0.0
    %1770 = vmatpush.msra.mxu0 0.0
    %1771 = vmatpush.msra.mxu0 0.0
    %1772 = vmatpush.msra.mxu0 0.0
    %1773 = vmatpush.msra.mxu0 0.0
    %1774 = vmatpush.msra.mxu0 0.0
    %1775 = vmatpush.msra.mxu0 %v1759
    %1776 = vmatpush.msra.mxu0 %v1749
    %1777 = vmatmul.f32.gmra.mxu0 %v1756
    %v1778 = vpop.f32.mrf.mxu0
    %v1779 = vadd.f32 %v1753, %v1778
    %1780 = vdwg.mxu0
    %vm1781 = vcmask 9216
    %1782 = vst.msk [vmem:[#allocation10] sm:$0x3] %vm1781, %v1779
    // Predicated region
    $region54: #{tpu_custom_call.1} parent=1 // pred_check
      _
    $region55: #{tpu_custom_call.1} parent=1 // pred_check_branch
      %1784 = sbr.rel (0) target = $region57
    $region56: #{tpu_custom_call.1} parent=1 // pred_region
      %1786 = vsyncadd [#allocation4], 0
      %s1788 = sshll.u32 [#allocation10], 4
      %s1789 = int_to_ptr.vmem [resolvable:$true] %s1788
      %s1790 = sshll.u32 %s9, 4
      %s1791 = int_to_ptr.hbm [resolvable:$true] %s1790
      %1793 = dma.vmem_to_hbm [thread:$0]  %s1789, 32, %s1791, [#allocation4]
    $region57: #{tpu_custom_call.1} parent=1 // pred_fallthru
      _
    // Predicated region
    $region58: #{tpu_custom_call.1} parent=1 // pred_check
      _
    $region59: #{tpu_custom_call.1} parent=1 // pred_check_branch
      %1795 = sbr.rel (0) target = $region61
    $region60: #{tpu_custom_call.1} parent=1 // pred_region
      %1797 = dma.done [#allocation4], 32
    $region61: #{tpu_custom_call.1} parent=1 // pred_fallthru
      _
    %1798 = vsyncpa [#allocation3], 1
    %1799 = vsyncpa [#allocation6], 1
    %1800 = vsyncpa [#allocation9], 1
    %1801 = vsyncpa [#allocation4], 1

</llo_original>
